<compile_context>
chip_gen: v7x
topology: tpu7x:2x2x1
jax: 0.10.0
libtpu: 0.0.40
codegen_flags: <defaults>
</compile_context>

<pallas_src>
import functools

import jax
import jax.numpy as jnp
from jax import lax
from jax.experimental import pallas as pl
from jax.experimental.pallas import tpu as pltpu

NEG_BIG = -1e30  # bias for padded logit lanes -> exp underflows to exactly 0


# ----------------------------------------------------------------------------
# Fused kernel: embedding -> BiLSTM -> max-over-time -> FC classifier -> softmax
# ----------------------------------------------------------------------------
def maxrnn_kernel(tok_ref,                            # (2*T*B, 1) int32
                  emb_ref,                            # (Vpad, E) bf16
                  wih_f_ref, wih_b_ref,               # (E, 4H) bf16 each
                  whh_ref,                            # (2H, 4H) bf16 = [whh_f; whh_b]
                  b_f_ref, b_b_ref,                   # (1, 4H) f32 each
                  s0_ref, t0_ref,                     # input BatchNorm1d (eval, folded)
                  w1_ref, b1_ref, s1_ref, t1_ref,     # Linear + BN (layer 1)
                  w2_ref, b2_ref, s2_ref, t2_ref,     # Linear + BN (layer 2)
                  w3_ref, b3_ref,                     # output Linear, padded to NPAD
                  out_ref):                           # (B, NPAD) f32 softmax
    f32, bf16 = jnp.float32, jnp.bfloat16
    B = out_ref.shape[0]
    H = whh_ref.shape[0] // 2
    TB2 = tok_ref.shape[0]
    TB = TB2 // 2
    T = TB // B
    Vp, E = emb_ref.shape

    # ---- embedding: one-hot MXU matmul (tiny vocab, padded to 128 lanes) ----
    # Rows [0:TB] are the forward-direction tokens in time-major order; rows
    # [TB:2TB] are the backward direction's tokens already time-reversed by the
    # wrapper, so no in-kernel reversal is needed anywhere.
    # TODO(synk): for a realistic vocab keep emb in HBM (pl.ANY) and row-gather
    # via scalar-prefetched token ids instead of the O(T*B*V) one-hot matmul.
    tok = tok_ref[...]                                               # (2TB, 1)
    onehot = (lax.broadcasted_iota(jnp.int32, (TB2, Vp), 1) == tok).astype(bf16)
    x_all = jnp.dot(onehot, emb_ref[...], preferred_element_type=f32)  # (2TB, E)
    x_bf = x_all.astype(bf16)

    # ---- hoisted input projections (one big matmul per direction, off the
    #      serial path), pre-stacked into (T, 2B, 4H) once before the loop ----
    gx_f = jnp.dot(x_bf[:TB], wih_f_ref[...], preferred_element_type=f32) + b_f_ref[...]
    gx_b = jnp.dot(x_bf[TB:], wih_b_ref[...], preferred_element_type=f32) + b_b_ref[...]
    gx = jnp.concatenate([gx_f.reshape(T, B, 4 * H),
                          gx_b.reshape(T, B, 4 * H)], axis=1)        # (T, 2B, 4H)

    whh = whh_ref[...]                                               # (2H, 4H)

    # Block-diagonal mask: rows 0:B carry [h_f | 0], rows B:2B carry [0 | h_b],
    # so ONE (2B,2H)@(2H,4H) matmul produces both directions' gates, stacked.
    row_f = lax.broadcasted_iota(jnp.int32, (2 * B, 2 * H), 0) < B
    col_f = lax.broadcasted_iota(jnp.int32, (2 * B, 2 * H), 1) < H
    diag_mask = (row_f == col_f).astype(f32)                         # hoisted

    # ---- recurrence, fully unrolled (T small & static) ----
    # TODO(synk): for large T/H keep gx in a VMEM scratch and use lax.fori_loop
    # to bound vreg live ranges; batch more sequences per call (M ~128/256) and
    # on v7x add a parallel batch-tile grid axis to use both TensorCores.
    h_all = jnp.zeros((2 * B, H), f32)            # h0 = c0 = 0 (MaxRNN.forward)
    c_all = jnp.zeros((2 * B, H), f32)
    m_all = jnp.full((2 * B, H), -jnp.inf, f32)   # running max over time

    for t in range(T):
        # single fused recurrent matmul for both directions
        h_blk = (jnp.tile(h_all, (1, 2)) * diag_mask).astype(bf16)   # (2B, 2H)
        rec = jnp.dot(h_blk, whh, preferred_element_type=f32)        # (2B, 4H)
        gates = gx[t] + rec

        # Gate columns host-permuted to [i, f, o | g]: one contiguous sigmoid
        # slab + one small tanh slab (element-wise math stays in f32).
        sig = jax.nn.sigmoid(gates[:, :3 * H])
        i = sig[:, 0 * H:1 * H]
        f = sig[:, 1 * H:2 * H]
        o = sig[:, 2 * H:3 * H]
        g = jnp.tanh(gates[:, 3 * H:])
        c_all = f * c_all + i * g
        h_all = o * jnp.tanh(c_all)
        # torch.max over time of the (B,T,2H) LSTM output == per-direction
        # running max, concatenated on the feature axis at the end.
        m_all = jnp.maximum(m_all, h_all)

    feat = jnp.concatenate([m_all[:B], m_all[B:]], axis=-1)          # (B, 2H)

    # ---- FC_Classifier (eval): BN -> [Linear, BN, ReLU] x2 -> Linear ----
    x = feat * s0_ref[...] + t0_ref[...]
    a1 = jnp.dot(x.astype(bf16), w1_ref[...], preferred_element_type=f32) + b1_ref[...]
    a1 = jnp.maximum(a1 * s1_ref[...] + t1_ref[...], 0.0)
    a2 = jnp.dot(a1.astype(bf16), w2_ref[...], preferred_element_type=f32) + b2_ref[...]
    a2 = jnp.maximum(a2 * s2_ref[...] + t2_ref[...], 0.0)
    logits = jnp.dot(a2.astype(bf16), w3_ref[...], preferred_element_type=f32) + b3_ref[...]

    # F.softmax over dim=1; padded lanes carry bias -1e30 -> probability 0.
    m = jnp.max(logits, axis=-1, keepdims=True)
    e = jnp.exp(logits - m)
    inv = pl.reciprocal(jnp.sum(e, axis=-1, keepdims=True), approx=False)
    out_ref[...] = e * inv


# ----------------------------------------------------------------------------
# Wrapper
# ----------------------------------------------------------------------------
def maxrnn_forward(tokens, params, *, n_labels):
    B, T = tokens.shape
    NPAD = params["w3"].shape[1]

    # Pad batch to a full sublane tile (>=8 rows).
    B_pad = max(8, ((B + 7) // 8) * 8)
    tok = jnp.zeros((B_pad, T), jnp.int32).at[:B, :].set(tokens)
    # Time-major forward stream + time-reversed backward stream.  Only int32
    # token ids are re-laid-out on the host; the float transpose / reversal is
    # absorbed by the kernel's layout.
    tok_f = jnp.transpose(tok, (1, 0)).reshape(T * B_pad)
    tok_b = jnp.transpose(tok[:, ::-1], (1, 0)).reshape(T * B_pad)
    tok_all = jnp.concatenate([tok_f, tok_b]).reshape(2 * T * B_pad, 1)

    args = (tok_all, params["emb"],
            params["wih_f"], params["wih_b"], params["whh"],
            params["b_f"], params["b_b"],
            params["s0"], params["t0"],
            params["w1"], params["b1"], params["s1"], params["t1"],
            params["w2"], params["b2"], params["s2"], params["t2"],
            params["w3"], params["b3"])

    vmem = pl.BlockSpec(memory_space=pltpu.MemorySpace.VMEM)
    out = pl.pallas_call(
        maxrnn_kernel,
        out_shape=jax.ShapeDtypeStruct((B_pad, NPAD), jnp.float32),
        in_specs=[vmem] * len(args),          # derived from args -> cannot mismatch
        out_specs=vmem,
    )(*args)
    return out[:B, :n_labels]


# ----------------------------------------------------------------------------
# Deterministic parameter construction (synthetic; shapes from MaxRNN.__init__)
# ----------------------------------------------------------------------------
def make_params(key, vocab, E, H, hidden_szs, n_labels, n_labels_pad=128):
    ks = iter(jax.random.split(key, 32))
    eps = 1e-5
    bf16 = jnp.bfloat16

    def uniform(k, shape, bound):
        return jax.random.uniform(k, shape, jnp.float32, -bound, bound)

    # PyTorch LSTM gate order is [i, f, g, o]; permute the 4H axis to
    # [i, f, o, g] so the kernel's sigmoid covers a contiguous 0:3H slab.
    def perm_gates(w):
        i, f, g, o = jnp.split(w, 4, axis=-1)
        return jnp.concatenate([i, f, o, g], axis=-1)

    p = {}
    # Lane-align the one-hot matmul K dim (pad rows are never selected).
    v_pad = ((vocab + 127) // 128) * 128
    emb = 0.1 * jax.random.normal(next(ks), (vocab, E), jnp.float32)
    p["emb"] = jnp.zeros((v_pad, E), jnp.float32).at[:vocab].set(emb).astype(bf16)

    # LSTM (PyTorch stores (4H, in); we store transposed (in, 4H); b = b_ih + b_hh)
    bound = 1.0 / (H ** 0.5)
    whh_blocks = []
    for d in ("f", "b"):
        p[f"wih_{d}"] = perm_gates(uniform(next(ks), (E, 4 * H), bound)).astype(bf16)
        whh_blocks.append(perm_gates(uniform(next(ks), (H, 4 * H), bound)))
        b_ih = uniform(next(ks), (4 * H,), bound)
        b_hh = uniform(next(ks), (4 * H,), bound)
        p[f"b_{d}"] = perm_gates((b_ih + b_hh).reshape(1, 4 * H))
    # Stack recurrent weights along K: one block-diagonal matmul per step
    # serves both directions.
    p["whh"] = jnp.concatenate(whh_blocks, axis=0).astype(bf16)      # (2H, 4H)

    # BatchNorm1d (eval): scale = gamma / sqrt(running_var + eps), shift = beta - rm*scale
    def bn(F):
        scale = jnp.full((1, F), 1.0 / (1.0 + eps) ** 0.5, jnp.float32)
        shift = jnp.zeros((1, F), jnp.float32)
        return scale, shift

    def linear(k1, k2, fin, fout):
        bnd = 1.0 / (fin ** 0.5)
        return uniform(k1, (fin, fout), bnd), uniform(k2, (fout,), bnd).reshape(1, fout)

    F0 = 2 * H
    hs1, hs2 = hidden_szs
    p["s0"], p["t0"] = bn(F0)

    w1, p["b1"] = linear(next(ks), next(ks), F0, hs1)
    p["w1"] = w1.astype(bf16)
    p["s1"], p["t1"] = bn(hs1)

    w2, p["b2"] = linear(next(ks), next(ks), hs1, hs2)
    p["w2"] = w2.astype(bf16)
    p["s2"], p["t2"] = bn(hs2)

    # Output head padded to a lane-dense width: zero weight columns, -1e30 bias
    # in pad lanes -> padded softmax probabilities are exactly 0.
    w3, b3 = linear(next(ks), next(ks), hs2, n_labels)
    w3p = jnp.zeros((hs2, n_labels_pad), jnp.float32).at[:, :n_labels].set(w3)
    b3p = jnp.full((1, n_labels_pad), NEG_BIG, jnp.float32).at[:, :n_labels].set(b3)
    p["w3"] = w3p.astype(bf16)
    p["b3"] = b3p
    return p


if __name__ == "__main__":
    B, T = 2, 8              # batch, seqlen
    VOCAB, E = 50, 32        # w2v.n_vocabs, w2v.n_embfactors
    H = 32                   # hidden_size (bidirectional -> features = 2H)
    HIDDEN_SZS = [128, 64]   # classifier_szs (scaled down from [2000, 1000])
    N_LABELS = 8

    key = jax.random.PRNGKey(0)
    k_tok, k_par = jax.random.split(key)
    tokens = jax.random.randint(k_tok, (B, T), 0, VOCAB, dtype=jnp.int32)
    params = make_params(k_par, VOCAB, E, H, HIDDEN_SZS, N_LABELS)

    fwd = jax.jit(functools.partial(maxrnn_forward, n_labels=N_LABELS))
    probs = jax.block_until_ready(fwd(tokens, params))

    assert probs.shape == (B, N_LABELS)
    assert bool(jnp.all(jnp.isfinite(probs)))
    assert bool(jnp.allclose(jnp.sum(probs, axis=-1), 1.0, atol=1e-3))
    print("KERNEL_OK")
</pallas_src>

<mosaic_0001>
module attributes {stable_mosaic.version = 11 : i64} {
  func.func @maxrnn_kernel(%arg0: memref<128x1xi32, #tpu.memory_space<vmem>>, %arg1: memref<128x32xbf16, #tpu.memory_space<vmem>>, %arg2: memref<32x128xbf16, #tpu.memory_space<vmem>>, %arg3: memref<32x128xbf16, #tpu.memory_space<vmem>>, %arg4: memref<64x128xbf16, #tpu.memory_space<vmem>>, %arg5: memref<1x128xf32, #tpu.memory_space<vmem>>, %arg6: memref<1x128xf32, #tpu.memory_space<vmem>>, %arg7: memref<1x64xf32, #tpu.memory_space<vmem>>, %arg8: memref<1x64xf32, #tpu.memory_space<vmem>>, %arg9: memref<64x128xbf16, #tpu.memory_space<vmem>>, %arg10: memref<1x128xf32, #tpu.memory_space<vmem>>, %arg11: memref<1x128xf32, #tpu.memory_space<vmem>>, %arg12: memref<1x128xf32, #tpu.memory_space<vmem>>, %arg13: memref<128x64xbf16, #tpu.memory_space<vmem>>, %arg14: memref<1x64xf32, #tpu.memory_space<vmem>>, %arg15: memref<1x64xf32, #tpu.memory_space<vmem>>, %arg16: memref<1x64xf32, #tpu.memory_space<vmem>>, %arg17: memref<64x128xbf16, #tpu.memory_space<vmem>>, %arg18: memref<1x128xf32, #tpu.memory_space<vmem>>, %arg19: memref<8x128xf32, #tpu.memory_space<vmem>>) attributes {dimension_semantics = [], scalar_prefetch = 0 : i64, scratch_operands = 0 : i64, tpu.core_type = #tpu.core_type<tc>} {
    %c0 = arith.constant 0 : index
    %c0_0 = arith.constant 0 : index
    %0 = vector.load %arg0[%c0, %c0_0] : memref<128x1xi32, #tpu.memory_space<vmem>>, vector<128x1xi32>
    %1 = tpu.iota {dimensions = array<i32: 1>} : vector<128x128xi32>
    %2 = vector.broadcast %0 : vector<128x1xi32> to vector<128x128xi32>
    %3 = arith.cmpi eq, %1, %2 : vector<128x128xi32>
    %4 = arith.extui %3 : vector<128x128xi1> to vector<128x128xi32>
    %5 = arith.sitofp %4 : vector<128x128xi32> to vector<128x128xf32>
    %6 = arith.truncf %5 : vector<128x128xf32> to vector<128x128xbf16>
    %c0_1 = arith.constant 0 : index
    %c0_2 = arith.constant 0 : index
    %7 = vector.load %arg1[%c0_1, %c0_2] : memref<128x32xbf16, #tpu.memory_space<vmem>>, vector<128x32xbf16>
    %cst = arith.constant dense<0.000000e+00> : vector<128x32xf32>
    %8 = tpu.matmul %6, %7, %cst {dimension_numbers = #tpu.dot_dimension_numbers<[1], [0], [0], [1], [0, 0, 1, 1], [], []>} : vector<128x128xbf16>, vector<128x32xbf16>, vector<128x32xf32> -> vector<128x32xf32>
    %9 = arith.truncf %8 : vector<128x32xf32> to vector<128x32xbf16>
    %10 = vector.extract_strided_slice %9 {offsets = [0, 0], sizes = [64, 32], strides = [1, 1]} : vector<128x32xbf16> to vector<64x32xbf16>
    %c0_3 = arith.constant 0 : index
    %c0_4 = arith.constant 0 : index
    %11 = vector.load %arg2[%c0_3, %c0_4] : memref<32x128xbf16, #tpu.memory_space<vmem>>, vector<32x128xbf16>
    %cst_5 = arith.constant dense<0.000000e+00> : vector<64x128xf32>
    %12 = tpu.matmul %10, %11, %cst_5 {dimension_numbers = #tpu.dot_dimension_numbers<[1], [0], [0], [1], [0, 0, 1, 1], [], []>} : vector<64x32xbf16>, vector<32x128xbf16>, vector<64x128xf32> -> vector<64x128xf32>
    %c0_6 = arith.constant 0 : index
    %c0_7 = arith.constant 0 : index
    %13 = vector.load %arg5[%c0_6, %c0_7] : memref<1x128xf32, #tpu.memory_space<vmem>>, vector<1x128xf32>
    %14 = vector.broadcast %13 : vector<1x128xf32> to vector<64x128xf32>
    %15 = arith.addf %12, %14 : vector<64x128xf32>
    %16 = vector.extract_strided_slice %9 {offsets = [64, 0], sizes = [64, 32], strides = [1, 1]} : vector<128x32xbf16> to vector<64x32xbf16>
    %c0_8 = arith.constant 0 : index
    %c0_9 = arith.constant 0 : index
    %17 = vector.load %arg3[%c0_8, %c0_9] : memref<32x128xbf16, #tpu.memory_space<vmem>>, vector<32x128xbf16>
    %cst_10 = arith.constant dense<0.000000e+00> : vector<64x128xf32>
    %18 = tpu.matmul %16, %17, %cst_10 {dimension_numbers = #tpu.dot_dimension_numbers<[1], [0], [0], [1], [0, 0, 1, 1], [], []>} : vector<64x32xbf16>, vector<32x128xbf16>, vector<64x128xf32> -> vector<64x128xf32>
    %c0_11 = arith.constant 0 : index
    %c0_12 = arith.constant 0 : index
    %19 = vector.load %arg6[%c0_11, %c0_12] : memref<1x128xf32, #tpu.memory_space<vmem>>, vector<1x128xf32>
    %20 = vector.broadcast %19 : vector<1x128xf32> to vector<64x128xf32>
    %21 = arith.addf %18, %20 : vector<64x128xf32>
    %22 = vector.shape_cast %15 : vector<64x128xf32> to vector<8x8x128xf32>
    %23 = vector.shape_cast %21 : vector<64x128xf32> to vector<8x8x128xf32>
    %24 = tpu.concatenate %22, %23 in 1 : vector<8x8x128xf32>, vector<8x8x128xf32> -> vector<8x16x128xf32>
    %c0_13 = arith.constant 0 : index
    %c0_14 = arith.constant 0 : index
    %25 = vector.load %arg4[%c0_13, %c0_14] : memref<64x128xbf16, #tpu.memory_space<vmem>>, vector<64x128xbf16>
    %26 = tpu.iota {dimensions = array<i32: 0>} : vector<16x64xi32>
    %c8_i32 = arith.constant 8 : i32
    %27 = vector.broadcast %c8_i32 : i32 to vector<16x64xi32>
    %28 = arith.cmpi slt, %26, %27 : vector<16x64xi32>
    %29 = tpu.iota {dimensions = array<i32: 1>} : vector<16x64xi32>
    %c32_i32 = arith.constant 32 : i32
    %30 = vector.broadcast %c32_i32 : i32 to vector<16x64xi32>
    %31 = arith.cmpi slt, %29, %30 : vector<16x64xi32>
    %32 = arith.xori %28, %31 : vector<16x64xi1>
    %cst_15 = arith.constant dense<true> : vector<16x64xi1>
    %33 = arith.xori %32, %cst_15 : vector<16x64xi1>
    %34 = arith.extui %33 : vector<16x64xi1> to vector<16x64xi32>
    %35 = arith.sitofp %34 : vector<16x64xi32> to vector<16x64xf32>
    %cst_16 = arith.constant 0.000000e+00 : f32
    %36 = vector.broadcast %cst_16 : f32 to vector<16x32xf32>
    %cst_17 = arith.constant 0.000000e+00 : f32
    %37 = vector.broadcast %cst_17 : f32 to vector<16x32xf32>
    %cst_18 = arith.constant 0xFF800000 : f32
    %38 = vector.broadcast %cst_18 : f32 to vector<16x32xf32>
    %39 = tpu.concatenate %36, %36 in 1 : vector<16x32xf32>, vector<16x32xf32> -> vector<16x64xf32>
    %40 = arith.mulf %39, %35 : vector<16x64xf32>
    %41 = arith.truncf %40 : vector<16x64xf32> to vector<16x64xbf16>
    %cst_19 = arith.constant dense<0.000000e+00> : vector<16x128xf32>
    %42 = tpu.matmul %41, %25, %cst_19 {dimension_numbers = #tpu.dot_dimension_numbers<[1], [0], [0], [1], [0, 0, 1, 1], [], []>} : vector<16x64xbf16>, vector<64x128xbf16>, vector<16x128xf32> -> vector<16x128xf32>
    %43 = vector.extract_strided_slice %24 {offsets = [0, 0, 0], sizes = [1, 16, 128], strides = [1, 1, 1]} : vector<8x16x128xf32> to vector<1x16x128xf32>
    %44 = vector.shape_cast %43 : vector<1x16x128xf32> to vector<16x128xf32>
    %45 = arith.addf %44, %42 : vector<16x128xf32>
    %46 = vector.extract_strided_slice %45 {offsets = [0, 0], sizes = [16, 96], strides = [1, 1]} : vector<16x128xf32> to vector<16x96xf32>
    %47 = arith.negf %46 : vector<16x96xf32>
    %48 = math.exp %47 : vector<16x96xf32>
    %cst_20 = arith.constant 1.000000e+00 : f32
    %49 = vector.broadcast %cst_20 : f32 to vector<16x96xf32>
    %50 = arith.addf %49, %48 : vector<16x96xf32>
    %51 = arith.divf %49, %50 : vector<16x96xf32>
    %52 = vector.extract_strided_slice %51 {offsets = [0, 0], sizes = [16, 32], strides = [1, 1]} : vector<16x96xf32> to vector<16x32xf32>
    %53 = vector.extract_strided_slice %51 {offsets = [0, 32], sizes = [16, 32], strides = [1, 1]} : vector<16x96xf32> to vector<16x32xf32>
    %54 = vector.extract_strided_slice %51 {offsets = [0, 64], sizes = [16, 32], strides = [1, 1]} : vector<16x96xf32> to vector<16x32xf32>
    %55 = vector.extract_strided_slice %45 {offsets = [0, 96], sizes = [16, 32], strides = [1, 1]} : vector<16x128xf32> to vector<16x32xf32>
    %56 = math.tanh %55 : vector<16x32xf32>
    %57 = arith.mulf %53, %37 : vector<16x32xf32>
    %58 = arith.mulf %52, %56 : vector<16x32xf32>
    %59 = arith.addf %57, %58 : vector<16x32xf32>
    %60 = math.tanh %59 : vector<16x32xf32>
    %61 = arith.mulf %54, %60 : vector<16x32xf32>
    %62 = arith.maximumf %38, %61 : vector<16x32xf32>
    %63 = tpu.concatenate %61, %61 in 1 : vector<16x32xf32>, vector<16x32xf32> -> vector<16x64xf32>
    %64 = arith.mulf %63, %35 : vector<16x64xf32>
    %65 = arith.truncf %64 : vector<16x64xf32> to vector<16x64xbf16>
    %cst_21 = arith.constant dense<0.000000e+00> : vector<16x128xf32>
    %66 = tpu.matmul %65, %25, %cst_21 {dimension_numbers = #tpu.dot_dimension_numbers<[1], [0], [0], [1], [0, 0, 1, 1], [], []>} : vector<16x64xbf16>, vector<64x128xbf16>, vector<16x128xf32> -> vector<16x128xf32>
    %67 = vector.extract_strided_slice %24 {offsets = [1, 0, 0], sizes = [1, 16, 128], strides = [1, 1, 1]} : vector<8x16x128xf32> to vector<1x16x128xf32>
    %68 = vector.shape_cast %67 : vector<1x16x128xf32> to vector<16x128xf32>
    %69 = arith.addf %68, %66 : vector<16x128xf32>
    %70 = vector.extract_strided_slice %69 {offsets = [0, 0], sizes = [16, 96], strides = [1, 1]} : vector<16x128xf32> to vector<16x96xf32>
    %71 = arith.negf %70 : vector<16x96xf32>
    %72 = math.exp %71 : vector<16x96xf32>
    %cst_22 = arith.constant 1.000000e+00 : f32
    %73 = vector.broadcast %cst_22 : f32 to vector<16x96xf32>
    %74 = arith.addf %73, %72 : vector<16x96xf32>
    %75 = arith.divf %73, %74 : vector<16x96xf32>
    %76 = vector.extract_strided_slice %75 {offsets = [0, 0], sizes = [16, 32], strides = [1, 1]} : vector<16x96xf32> to vector<16x32xf32>
    %77 = vector.extract_strided_slice %75 {offsets = [0, 32], sizes = [16, 32], strides = [1, 1]} : vector<16x96xf32> to vector<16x32xf32>
    %78 = vector.extract_strided_slice %75 {offsets = [0, 64], sizes = [16, 32], strides = [1, 1]} : vector<16x96xf32> to vector<16x32xf32>
    %79 = vector.extract_strided_slice %69 {offsets = [0, 96], sizes = [16, 32], strides = [1, 1]} : vector<16x128xf32> to vector<16x32xf32>
    %80 = math.tanh %79 : vector<16x32xf32>
    %81 = arith.mulf %77, %59 : vector<16x32xf32>
    %82 = arith.mulf %76, %80 : vector<16x32xf32>
    %83 = arith.addf %81, %82 : vector<16x32xf32>
    %84 = math.tanh %83 : vector<16x32xf32>
    %85 = arith.mulf %78, %84 : vector<16x32xf32>
    %86 = arith.maximumf %62, %85 : vector<16x32xf32>
    %87 = tpu.concatenate %85, %85 in 1 : vector<16x32xf32>, vector<16x32xf32> -> vector<16x64xf32>
    %88 = arith.mulf %87, %35 : vector<16x64xf32>
    %89 = arith.truncf %88 : vector<16x64xf32> to vector<16x64xbf16>
    %cst_23 = arith.constant dense<0.000000e+00> : vector<16x128xf32>
    %90 = tpu.matmul %89, %25, %cst_23 {dimension_numbers = #tpu.dot_dimension_numbers<[1], [0], [0], [1], [0, 0, 1, 1], [], []>} : vector<16x64xbf16>, vector<64x128xbf16>, vector<16x128xf32> -> vector<16x128xf32>
    %91 = vector.extract_strided_slice %24 {offsets = [2, 0, 0], sizes = [1, 16, 128], strides = [1, 1, 1]} : vector<8x16x128xf32> to vector<1x16x128xf32>
    %92 = vector.shape_cast %91 : vector<1x16x128xf32> to vector<16x128xf32>
    %93 = arith.addf %92, %90 : vector<16x128xf32>
    %94 = vector.extract_strided_slice %93 {offsets = [0, 0], sizes = [16, 96], strides = [1, 1]} : vector<16x128xf32> to vector<16x96xf32>
    %95 = arith.negf %94 : vector<16x96xf32>
    %96 = math.exp %95 : vector<16x96xf32>
    %cst_24 = arith.constant 1.000000e+00 : f32
    %97 = vector.broadcast %cst_24 : f32 to vector<16x96xf32>
    %98 = arith.addf %97, %96 : vector<16x96xf32>
    %99 = arith.divf %97, %98 : vector<16x96xf32>
    %100 = vector.extract_strided_slice %99 {offsets = [0, 0], sizes = [16, 32], strides = [1, 1]} : vector<16x96xf32> to vector<16x32xf32>
    %101 = vector.extract_strided_slice %99 {offsets = [0, 32], sizes = [16, 32], strides = [1, 1]} : vector<16x96xf32> to vector<16x32xf32>
    %102 = vector.extract_strided_slice %99 {offsets = [0, 64], sizes = [16, 32], strides = [1, 1]} : vector<16x96xf32> to vector<16x32xf32>
    %103 = vector.extract_strided_slice %93 {offsets = [0, 96], sizes = [16, 32], strides = [1, 1]} : vector<16x128xf32> to vector<16x32xf32>
    %104 = math.tanh %103 : vector<16x32xf32>
    %105 = arith.mulf %101, %83 : vector<16x32xf32>
    %106 = arith.mulf %100, %104 : vector<16x32xf32>
    %107 = arith.addf %105, %106 : vector<16x32xf32>
    %108 = math.tanh %107 : vector<16x32xf32>
    %109 = arith.mulf %102, %108 : vector<16x32xf32>
    %110 = arith.maximumf %86, %109 : vector<16x32xf32>
    %111 = tpu.concatenate %109, %109 in 1 : vector<16x32xf32>, vector<16x32xf32> -> vector<16x64xf32>
    %112 = arith.mulf %111, %35 : vector<16x64xf32>
    %113 = arith.truncf %112 : vector<16x64xf32> to vector<16x64xbf16>
    %cst_25 = arith.constant dense<0.000000e+00> : vector<16x128xf32>
    %114 = tpu.matmul %113, %25, %cst_25 {dimension_numbers = #tpu.dot_dimension_numbers<[1], [0], [0], [1], [0, 0, 1, 1], [], []>} : vector<16x64xbf16>, vector<64x128xbf16>, vector<16x128xf32> -> vector<16x128xf32>
    %115 = vector.extract_strided_slice %24 {offsets = [3, 0, 0], sizes = [1, 16, 128], strides = [1, 1, 1]} : vector<8x16x128xf32> to vector<1x16x128xf32>
    %116 = vector.shape_cast %115 : vector<1x16x128xf32> to vector<16x128xf32>
    %117 = arith.addf %116, %114 : vector<16x128xf32>
    %118 = vector.extract_strided_slice %117 {offsets = [0, 0], sizes = [16, 96], strides = [1, 1]} : vector<16x128xf32> to vector<16x96xf32>
    %119 = arith.negf %118 : vector<16x96xf32>
    %120 = math.exp %119 : vector<16x96xf32>
    %cst_26 = arith.constant 1.000000e+00 : f32
    %121 = vector.broadcast %cst_26 : f32 to vector<16x96xf32>
    %122 = arith.addf %121, %120 : vector<16x96xf32>
    %123 = arith.divf %121, %122 : vector<16x96xf32>
    %124 = vector.extract_strided_slice %123 {offsets = [0, 0], sizes = [16, 32], strides = [1, 1]} : vector<16x96xf32> to vector<16x32xf32>
    %125 = vector.extract_strided_slice %123 {offsets = [0, 32], sizes = [16, 32], strides = [1, 1]} : vector<16x96xf32> to vector<16x32xf32>
    %126 = vector.extract_strided_slice %123 {offsets = [0, 64], sizes = [16, 32], strides = [1, 1]} : vector<16x96xf32> to vector<16x32xf32>
    %127 = vector.extract_strided_slice %117 {offsets = [0, 96], sizes = [16, 32], strides = [1, 1]} : vector<16x128xf32> to vector<16x32xf32>
    %128 = math.tanh %127 : vector<16x32xf32>
    %129 = arith.mulf %125, %107 : vector<16x32xf32>
    %130 = arith.mulf %124, %128 : vector<16x32xf32>
    %131 = arith.addf %129, %130 : vector<16x32xf32>
    %132 = math.tanh %131 : vector<16x32xf32>
    %133 = arith.mulf %126, %132 : vector<16x32xf32>
    %134 = arith.maximumf %110, %133 : vector<16x32xf32>
    %135 = tpu.concatenate %133, %133 in 1 : vector<16x32xf32>, vector<16x32xf32> -> vector<16x64xf32>
    %136 = arith.mulf %135, %35 : vector<16x64xf32>
    %137 = arith.truncf %136 : vector<16x64xf32> to vector<16x64xbf16>
    %cst_27 = arith.constant dense<0.000000e+00> : vector<16x128xf32>
    %138 = tpu.matmul %137, %25, %cst_27 {dimension_numbers = #tpu.dot_dimension_numbers<[1], [0], [0], [1], [0, 0, 1, 1], [], []>} : vector<16x64xbf16>, vector<64x128xbf16>, vector<16x128xf32> -> vector<16x128xf32>
    %139 = vector.extract_strided_slice %24 {offsets = [4, 0, 0], sizes = [1, 16, 128], strides = [1, 1, 1]} : vector<8x16x128xf32> to vector<1x16x128xf32>
    %140 = vector.shape_cast %139 : vector<1x16x128xf32> to vector<16x128xf32>
    %141 = arith.addf %140, %138 : vector<16x128xf32>
    %142 = vector.extract_strided_slice %141 {offsets = [0, 0], sizes = [16, 96], strides = [1, 1]} : vector<16x128xf32> to vector<16x96xf32>
    %143 = arith.negf %142 : vector<16x96xf32>
    %144 = math.exp %143 : vector<16x96xf32>
    %cst_28 = arith.constant 1.000000e+00 : f32
    %145 = vector.broadcast %cst_28 : f32 to vector<16x96xf32>
    %146 = arith.addf %145, %144 : vector<16x96xf32>
    %147 = arith.divf %145, %146 : vector<16x96xf32>
    %148 = vector.extract_strided_slice %147 {offsets = [0, 0], sizes = [16, 32], strides = [1, 1]} : vector<16x96xf32> to vector<16x32xf32>
    %149 = vector.extract_strided_slice %147 {offsets = [0, 32], sizes = [16, 32], strides = [1, 1]} : vector<16x96xf32> to vector<16x32xf32>
    %150 = vector.extract_strided_slice %147 {offsets = [0, 64], sizes = [16, 32], strides = [1, 1]} : vector<16x96xf32> to vector<16x32xf32>
    %151 = vector.extract_strided_slice %141 {offsets = [0, 96], sizes = [16, 32], strides = [1, 1]} : vector<16x128xf32> to vector<16x32xf32>
    %152 = math.tanh %151 : vector<16x32xf32>
    %153 = arith.mulf %149, %131 : vector<16x32xf32>
    %154 = arith.mulf %148, %152 : vector<16x32xf32>
    %155 = arith.addf %153, %154 : vector<16x32xf32>
    %156 = math.tanh %155 : vector<16x32xf32>
    %157 = arith.mulf %150, %156 : vector<16x32xf32>
    %158 = arith.maximumf %134, %157 : vector<16x32xf32>
    %159 = tpu.concatenate %157, %157 in 1 : vector<16x32xf32>, vector<16x32xf32> -> vector<16x64xf32>
    %160 = arith.mulf %159, %35 : vector<16x64xf32>
    %161 = arith.truncf %160 : vector<16x64xf32> to vector<16x64xbf16>
    %cst_29 = arith.constant dense<0.000000e+00> : vector<16x128xf32>
    %162 = tpu.matmul %161, %25, %cst_29 {dimension_numbers = #tpu.dot_dimension_numbers<[1], [0], [0], [1], [0, 0, 1, 1], [], []>} : vector<16x64xbf16>, vector<64x128xbf16>, vector<16x128xf32> -> vector<16x128xf32>
    %163 = vector.extract_strided_slice %24 {offsets = [5, 0, 0], sizes = [1, 16, 128], strides = [1, 1, 1]} : vector<8x16x128xf32> to vector<1x16x128xf32>
    %164 = vector.shape_cast %163 : vector<1x16x128xf32> to vector<16x128xf32>
    %165 = arith.addf %164, %162 : vector<16x128xf32>
    %166 = vector.extract_strided_slice %165 {offsets = [0, 0], sizes = [16, 96], strides = [1, 1]} : vector<16x128xf32> to vector<16x96xf32>
    %167 = arith.negf %166 : vector<16x96xf32>
    %168 = math.exp %167 : vector<16x96xf32>
    %cst_30 = arith.constant 1.000000e+00 : f32
    %169 = vector.broadcast %cst_30 : f32 to vector<16x96xf32>
    %170 = arith.addf %169, %168 : vector<16x96xf32>
    %171 = arith.divf %169, %170 : vector<16x96xf32>
    %172 = vector.extract_strided_slice %171 {offsets = [0, 0], sizes = [16, 32], strides = [1, 1]} : vector<16x96xf32> to vector<16x32xf32>
    %173 = vector.extract_strided_slice %171 {offsets = [0, 32], sizes = [16, 32], strides = [1, 1]} : vector<16x96xf32> to vector<16x32xf32>
    %174 = vector.extract_strided_slice %171 {offsets = [0, 64], sizes = [16, 32], strides = [1, 1]} : vector<16x96xf32> to vector<16x32xf32>
    %175 = vector.extract_strided_slice %165 {offsets = [0, 96], sizes = [16, 32], strides = [1, 1]} : vector<16x128xf32> to vector<16x32xf32>
    %176 = math.tanh %175 : vector<16x32xf32>
    %177 = arith.mulf %173, %155 : vector<16x32xf32>
    %178 = arith.mulf %172, %176 : vector<16x32xf32>
    %179 = arith.addf %177, %178 : vector<16x32xf32>
    %180 = math.tanh %179 : vector<16x32xf32>
    %181 = arith.mulf %174, %180 : vector<16x32xf32>
    %182 = arith.maximumf %158, %181 : vector<16x32xf32>
    %183 = tpu.concatenate %181, %181 in 1 : vector<16x32xf32>, vector<16x32xf32> -> vector<16x64xf32>
    %184 = arith.mulf %183, %35 : vector<16x64xf32>
    %185 = arith.truncf %184 : vector<16x64xf32> to vector<16x64xbf16>
    %cst_31 = arith.constant dense<0.000000e+00> : vector<16x128xf32>
    %186 = tpu.matmul %185, %25, %cst_31 {dimension_numbers = #tpu.dot_dimension_numbers<[1], [0], [0], [1], [0, 0, 1, 1], [], []>} : vector<16x64xbf16>, vector<64x128xbf16>, vector<16x128xf32> -> vector<16x128xf32>
    %187 = vector.extract_strided_slice %24 {offsets = [6, 0, 0], sizes = [1, 16, 128], strides = [1, 1, 1]} : vector<8x16x128xf32> to vector<1x16x128xf32>
    %188 = vector.shape_cast %187 : vector<1x16x128xf32> to vector<16x128xf32>
    %189 = arith.addf %188, %186 : vector<16x128xf32>
    %190 = vector.extract_strided_slice %189 {offsets = [0, 0], sizes = [16, 96], strides = [1, 1]} : vector<16x128xf32> to vector<16x96xf32>
    %191 = arith.negf %190 : vector<16x96xf32>
    %192 = math.exp %191 : vector<16x96xf32>
    %cst_32 = arith.constant 1.000000e+00 : f32
    %193 = vector.broadcast %cst_32 : f32 to vector<16x96xf32>
    %194 = arith.addf %193, %192 : vector<16x96xf32>
    %195 = arith.divf %193, %194 : vector<16x96xf32>
    %196 = vector.extract_strided_slice %195 {offsets = [0, 0], sizes = [16, 32], strides = [1, 1]} : vector<16x96xf32> to vector<16x32xf32>
    %197 = vector.extract_strided_slice %195 {offsets = [0, 32], sizes = [16, 32], strides = [1, 1]} : vector<16x96xf32> to vector<16x32xf32>
    %198 = vector.extract_strided_slice %195 {offsets = [0, 64], sizes = [16, 32], strides = [1, 1]} : vector<16x96xf32> to vector<16x32xf32>
    %199 = vector.extract_strided_slice %189 {offsets = [0, 96], sizes = [16, 32], strides = [1, 1]} : vector<16x128xf32> to vector<16x32xf32>
    %200 = math.tanh %199 : vector<16x32xf32>
    %201 = arith.mulf %197, %179 : vector<16x32xf32>
    %202 = arith.mulf %196, %200 : vector<16x32xf32>
    %203 = arith.addf %201, %202 : vector<16x32xf32>
    %204 = math.tanh %203 : vector<16x32xf32>
    %205 = arith.mulf %198, %204 : vector<16x32xf32>
    %206 = arith.maximumf %182, %205 : vector<16x32xf32>
    %207 = tpu.concatenate %205, %205 in 1 : vector<16x32xf32>, vector<16x32xf32> -> vector<16x64xf32>
    %208 = arith.mulf %207, %35 : vector<16x64xf32>
    %209 = arith.truncf %208 : vector<16x64xf32> to vector<16x64xbf16>
    %cst_33 = arith.constant dense<0.000000e+00> : vector<16x128xf32>
    %210 = tpu.matmul %209, %25, %cst_33 {dimension_numbers = #tpu.dot_dimension_numbers<[1], [0], [0], [1], [0, 0, 1, 1], [], []>} : vector<16x64xbf16>, vector<64x128xbf16>, vector<16x128xf32> -> vector<16x128xf32>
    %211 = vector.extract_strided_slice %24 {offsets = [7, 0, 0], sizes = [1, 16, 128], strides = [1, 1, 1]} : vector<8x16x128xf32> to vector<1x16x128xf32>
    %212 = vector.shape_cast %211 : vector<1x16x128xf32> to vector<16x128xf32>
    %213 = arith.addf %212, %210 : vector<16x128xf32>
    %214 = vector.extract_strided_slice %213 {offsets = [0, 0], sizes = [16, 96], strides = [1, 1]} : vector<16x128xf32> to vector<16x96xf32>
    %215 = arith.negf %214 : vector<16x96xf32>
    %216 = math.exp %215 : vector<16x96xf32>
    %cst_34 = arith.constant 1.000000e+00 : f32
    %217 = vector.broadcast %cst_34 : f32 to vector<16x96xf32>
    %218 = arith.addf %217, %216 : vector<16x96xf32>
    %219 = arith.divf %217, %218 : vector<16x96xf32>
    %220 = vector.extract_strided_slice %219 {offsets = [0, 0], sizes = [16, 32], strides = [1, 1]} : vector<16x96xf32> to vector<16x32xf32>
    %221 = vector.extract_strided_slice %219 {offsets = [0, 32], sizes = [16, 32], strides = [1, 1]} : vector<16x96xf32> to vector<16x32xf32>
    %222 = vector.extract_strided_slice %219 {offsets = [0, 64], sizes = [16, 32], strides = [1, 1]} : vector<16x96xf32> to vector<16x32xf32>
    %223 = vector.extract_strided_slice %213 {offsets = [0, 96], sizes = [16, 32], strides = [1, 1]} : vector<16x128xf32> to vector<16x32xf32>
    %224 = math.tanh %223 : vector<16x32xf32>
    %225 = arith.mulf %221, %203 : vector<16x32xf32>
    %226 = arith.mulf %220, %224 : vector<16x32xf32>
    %227 = arith.addf %225, %226 : vector<16x32xf32>
    %228 = math.tanh %227 : vector<16x32xf32>
    %229 = arith.mulf %222, %228 : vector<16x32xf32>
    %230 = arith.maximumf %206, %229 : vector<16x32xf32>
    %231 = vector.extract_strided_slice %230 {offsets = [0, 0], sizes = [8, 32], strides = [1, 1]} : vector<16x32xf32> to vector<8x32xf32>
    %232 = vector.extract_strided_slice %230 {offsets = [8, 0], sizes = [8, 32], strides = [1, 1]} : vector<16x32xf32> to vector<8x32xf32>
    %233 = tpu.concatenate %231, %232 in 1 : vector<8x32xf32>, vector<8x32xf32> -> vector<8x64xf32>
    %c0_35 = arith.constant 0 : index
    %c0_36 = arith.constant 0 : index
    %234 = vector.load %arg7[%c0_35, %c0_36] : memref<1x64xf32, #tpu.memory_space<vmem>>, vector<1x64xf32>
    %235 = vector.broadcast %234 : vector<1x64xf32> to vector<8x64xf32>
    %236 = arith.mulf %233, %235 : vector<8x64xf32>
    %c0_37 = arith.constant 0 : index
    %c0_38 = arith.constant 0 : index
    %237 = vector.load %arg8[%c0_37, %c0_38] : memref<1x64xf32, #tpu.memory_space<vmem>>, vector<1x64xf32>
    %238 = vector.broadcast %237 : vector<1x64xf32> to vector<8x64xf32>
    %239 = arith.addf %236, %238 : vector<8x64xf32>
    %240 = arith.truncf %239 : vector<8x64xf32> to vector<8x64xbf16>
    %c0_39 = arith.constant 0 : index
    %c0_40 = arith.constant 0 : index
    %241 = vector.load %arg9[%c0_39, %c0_40] : memref<64x128xbf16, #tpu.memory_space<vmem>>, vector<64x128xbf16>
    %cst_41 = arith.constant dense<0.000000e+00> : vector<8x128xf32>
    %242 = tpu.matmul %240, %241, %cst_41 {dimension_numbers = #tpu.dot_dimension_numbers<[1], [0], [0], [1], [0, 0, 1, 1], [], []>} : vector<8x64xbf16>, vector<64x128xbf16>, vector<8x128xf32> -> vector<8x128xf32>
    %c0_42 = arith.constant 0 : index
    %c0_43 = arith.constant 0 : index
    %243 = vector.load %arg10[%c0_42, %c0_43] : memref<1x128xf32, #tpu.memory_space<vmem>>, vector<1x128xf32>
    %244 = vector.broadcast %243 : vector<1x128xf32> to vector<8x128xf32>
    %245 = arith.addf %242, %244 : vector<8x128xf32>
    %c0_44 = arith.constant 0 : index
    %c0_45 = arith.constant 0 : index
    %246 = vector.load %arg11[%c0_44, %c0_45] : memref<1x128xf32, #tpu.memory_space<vmem>>, vector<1x128xf32>
    %247 = vector.broadcast %246 : vector<1x128xf32> to vector<8x128xf32>
    %248 = arith.mulf %245, %247 : vector<8x128xf32>
    %c0_46 = arith.constant 0 : index
    %c0_47 = arith.constant 0 : index
    %249 = vector.load %arg12[%c0_46, %c0_47] : memref<1x128xf32, #tpu.memory_space<vmem>>, vector<1x128xf32>
    %250 = vector.broadcast %249 : vector<1x128xf32> to vector<8x128xf32>
    %251 = arith.addf %248, %250 : vector<8x128xf32>
    %cst_48 = arith.constant 0.000000e+00 : f32
    %252 = vector.broadcast %cst_48 : f32 to vector<8x128xf32>
    %253 = arith.maximumf %251, %252 : vector<8x128xf32>
    %254 = arith.truncf %253 : vector<8x128xf32> to vector<8x128xbf16>
    %c0_49 = arith.constant 0 : index
    %c0_50 = arith.constant 0 : index
    %255 = vector.load %arg13[%c0_49, %c0_50] : memref<128x64xbf16, #tpu.memory_space<vmem>>, vector<128x64xbf16>
    %cst_51 = arith.constant dense<0.000000e+00> : vector<8x64xf32>
    %256 = tpu.matmul %254, %255, %cst_51 {dimension_numbers = #tpu.dot_dimension_numbers<[1], [0], [0], [1], [0, 0, 1, 1], [], []>} : vector<8x128xbf16>, vector<128x64xbf16>, vector<8x64xf32> -> vector<8x64xf32>
    %c0_52 = arith.constant 0 : index
    %c0_53 = arith.constant 0 : index
    %257 = vector.load %arg14[%c0_52, %c0_53] : memref<1x64xf32, #tpu.memory_space<vmem>>, vector<1x64xf32>
    %258 = vector.broadcast %257 : vector<1x64xf32> to vector<8x64xf32>
    %259 = arith.addf %256, %258 : vector<8x64xf32>
    %c0_54 = arith.constant 0 : index
    %c0_55 = arith.constant 0 : index
    %260 = vector.load %arg15[%c0_54, %c0_55] : memref<1x64xf32, #tpu.memory_space<vmem>>, vector<1x64xf32>
    %261 = vector.broadcast %260 : vector<1x64xf32> to vector<8x64xf32>
    %262 = arith.mulf %259, %261 : vector<8x64xf32>
    %c0_56 = arith.constant 0 : index
    %c0_57 = arith.constant 0 : index
    %263 = vector.load %arg16[%c0_56, %c0_57] : memref<1x64xf32, #tpu.memory_space<vmem>>, vector<1x64xf32>
    %264 = vector.broadcast %263 : vector<1x64xf32> to vector<8x64xf32>
    %265 = arith.addf %262, %264 : vector<8x64xf32>
    %cst_58 = arith.constant 0.000000e+00 : f32
    %266 = vector.broadcast %cst_58 : f32 to vector<8x64xf32>
    %267 = arith.maximumf %265, %266 : vector<8x64xf32>
    %268 = arith.truncf %267 : vector<8x64xf32> to vector<8x64xbf16>
    %c0_59 = arith.constant 0 : index
    %c0_60 = arith.constant 0 : index
    %269 = vector.load %arg17[%c0_59, %c0_60] : memref<64x128xbf16, #tpu.memory_space<vmem>>, vector<64x128xbf16>
    %cst_61 = arith.constant dense<0.000000e+00> : vector<8x128xf32>
    %270 = tpu.matmul %268, %269, %cst_61 {dimension_numbers = #tpu.dot_dimension_numbers<[1], [0], [0], [1], [0, 0, 1, 1], [], []>} : vector<8x64xbf16>, vector<64x128xbf16>, vector<8x128xf32> -> vector<8x128xf32>
    %c0_62 = arith.constant 0 : index
    %c0_63 = arith.constant 0 : index
    %271 = vector.load %arg18[%c0_62, %c0_63] : memref<1x128xf32, #tpu.memory_space<vmem>>, vector<1x128xf32>
    %272 = vector.broadcast %271 : vector<1x128xf32> to vector<8x128xf32>
    %273 = arith.addf %270, %272 : vector<8x128xf32>
    %cst_64 = arith.constant dense<0xFF800000> : vector<8xf32>
    %274 = vector.multi_reduction <maximumf>, %273, %cst_64 [1] : vector<8x128xf32> to vector<8xf32>
    %275 = vector.shape_cast %274 : vector<8xf32> to vector<8x1xf32>
    %276 = vector.broadcast %275 : vector<8x1xf32> to vector<8x128xf32>
    %277 = arith.subf %273, %276 : vector<8x128xf32>
    %278 = math.exp %277 : vector<8x128xf32>
    %cst_65 = arith.constant dense<0.000000e+00> : vector<8xf32>
    %279 = vector.multi_reduction <add>, %278, %cst_65 [1] : vector<8x128xf32> to vector<8xf32>
    %280 = vector.shape_cast %279 : vector<8xf32> to vector<8x1xf32>
    %281 = tpu.reciprocal %280 : vector<8x1xf32> -> vector<8x1xf32>
    %282 = vector.broadcast %281 : vector<8x1xf32> to vector<8x128xf32>
    %283 = arith.mulf %278, %282 : vector<8x128xf32>
    %c0_66 = arith.constant 0 : index
    %c0_67 = arith.constant 0 : index
    %284 = vector.load %arg19[%c0_66, %c0_67] : memref<8x128xf32, #tpu.memory_space<vmem>>, vector<8x128xf32>
    tpu.vector_store %arg19[%c0_66, %c0_67], %283 {strides = array<i32>} : memref<8x128xf32, #tpu.memory_space<vmem>>, vector<8x128xf32>,
    return
  }
}

</mosaic_0001>

<llo_original>
// kernel: maxrnn_forward.1
$region0: #{maxrnn_forward.1}
  #allocation0 [shape = 'u32[]', space=smem, size = 0x4, offset = 0x4, fixed_abs, tag = 'smem constant byte address 0x4 - core index']
  #allocation1 [shape = 'u32[144,128]{1,0:T(1,128)}', space=vmem, size = 0x12000, scoped, tag = 'internal scratch']
  %s0 = inlined_call_operand.vmem [shape: s32[128,1], index: 0, kind: input, shape index: {}]
  %s1 = inlined_call_operand.vmem [shape: bf16[128,32], index: 1, kind: input, shape index: {}]
  %s2 = inlined_call_operand.vmem [shape: bf16[32,128], index: 2, kind: input, shape index: {}]
  %s3 = inlined_call_operand.vmem [shape: bf16[32,128], index: 3, kind: input, shape index: {}]
  %s4 = inlined_call_operand.vmem [shape: bf16[64,128], index: 4, kind: input, shape index: {}]
  %s5 = inlined_call_operand.vmem [shape: f32[1,128], index: 5, kind: input, shape index: {}]
  %s6 = inlined_call_operand.vmem [shape: f32[1,128], index: 6, kind: input, shape index: {}]
  %s7 = inlined_call_operand.vmem [shape: f32[1,64], index: 7, kind: input, shape index: {}]
  %s8 = inlined_call_operand.vmem [shape: f32[1,64], index: 8, kind: input, shape index: {}]
  %s9 = inlined_call_operand.vmem [shape: bf16[64,128], index: 9, kind: input, shape index: {}]
  %s10 = inlined_call_operand.vmem [shape: f32[1,128], index: 10, kind: input, shape index: {}]
  %s11 = inlined_call_operand.vmem [shape: f32[1,128], index: 11, kind: input, shape index: {}]
  %s12 = inlined_call_operand.vmem [shape: f32[1,128], index: 12, kind: input, shape index: {}]
  %s13 = inlined_call_operand.vmem [shape: bf16[128,64], index: 13, kind: input, shape index: {}]
  %s14 = inlined_call_operand.vmem [shape: f32[1,64], index: 14, kind: input, shape index: {}]
  %s15 = inlined_call_operand.vmem [shape: f32[1,64], index: 15, kind: input, shape index: {}]
  %s16 = inlined_call_operand.vmem [shape: f32[1,64], index: 16, kind: input, shape index: {}]
  %s17 = inlined_call_operand.vmem [shape: bf16[64,128], index: 17, kind: input, shape index: {}]
  %s18 = inlined_call_operand.vmem [shape: f32[1,128], index: 18, kind: input, shape index: {}]
  %s19 = inlined_call_operand.vmem [shape: f32[8,128], index: 19, kind: output, shape index: {}]
  %s20 = sld [smem:[#allocation0]]
  $region86: #{maxrnn_forward.1} parent=0
    _
  %s22 = ssub.s32 1, %s20
  %s23 = scalar_select 0, %s22, %s20
  // Predicated region
  $region2: #{maxrnn_forward.1} parent=0 // pred_check
    _
  $region3: #{maxrnn_forward.1} parent=0 // pred_check_branch
    %25 = sbr.rel (0) target = $region5
  $region4: #{maxrnn_forward.1} parent=0 // pred_region
    _
  $region5: #{maxrnn_forward.1} parent=0 // pred_fallthru
    _
  // Predicated region
  $region6: #{maxrnn_forward.1} parent=0 // pred_check
    _
  $region7: #{maxrnn_forward.1} parent=0 // pred_check_branch
    %27 = sbr.rel (0) target = $region9
  $region8: #{maxrnn_forward.1} parent=0 // pred_region
    _
  $region9: #{maxrnn_forward.1} parent=0 // pred_fallthru
    _
  // Predicated region
  $region10: #{maxrnn_forward.1} parent=0 // pred_check
    _
  $region11: #{maxrnn_forward.1} parent=0 // pred_check_branch
    %29 = sbr.rel (0) target = $region13
  $region12: #{maxrnn_forward.1} parent=0 // pred_region
    _
  $region13: #{maxrnn_forward.1} parent=0 // pred_fallthru
    _
  // Predicated region
  $region14: #{maxrnn_forward.1} parent=0 // pred_check
    _
  $region15: #{maxrnn_forward.1} parent=0 // pred_check_branch
    %31 = sbr.rel (0) target = $region17
  $region16: #{maxrnn_forward.1} parent=0 // pred_region
    _
  $region17: #{maxrnn_forward.1} parent=0 // pred_fallthru
    _
  // Predicated region
  $region18: #{maxrnn_forward.1} parent=0 // pred_check
    _
  $region19: #{maxrnn_forward.1} parent=0 // pred_check_branch
    %33 = sbr.rel (0) target = $region21
  $region20: #{maxrnn_forward.1} parent=0 // pred_region
    _
  $region21: #{maxrnn_forward.1} parent=0 // pred_fallthru
    _
  // Predicated region
  $region22: #{maxrnn_forward.1} parent=0 // pred_check
    _
  $region23: #{maxrnn_forward.1} parent=0 // pred_check_branch
    %35 = sbr.rel (0) target = $region25
  $region24: #{maxrnn_forward.1} parent=0 // pred_region
    _
  $region25: #{maxrnn_forward.1} parent=0 // pred_fallthru
    _
  // Predicated region
  $region26: #{maxrnn_forward.1} parent=0 // pred_check
    _
  $region27: #{maxrnn_forward.1} parent=0 // pred_check_branch
    %37 = sbr.rel (0) target = $region29
  $region28: #{maxrnn_forward.1} parent=0 // pred_region
    _
  $region29: #{maxrnn_forward.1} parent=0 // pred_fallthru
    _
  // Predicated region
  $region30: #{maxrnn_forward.1} parent=0 // pred_check
    _
  $region31: #{maxrnn_forward.1} parent=0 // pred_check_branch
    %39 = sbr.rel (0) target = $region33
  $region32: #{maxrnn_forward.1} parent=0 // pred_region
    _
  $region33: #{maxrnn_forward.1} parent=0 // pred_fallthru
    _
  // Predicated region
  $region34: #{maxrnn_forward.1} parent=0 // pred_check
    _
  $region35: #{maxrnn_forward.1} parent=0 // pred_check_branch
    %41 = sbr.rel (0) target = $region37
  $region36: #{maxrnn_forward.1} parent=0 // pred_region
    _
  $region37: #{maxrnn_forward.1} parent=0 // pred_fallthru
    _
  // Predicated region
  $region38: #{maxrnn_forward.1} parent=0 // pred_check
    _
  $region39: #{maxrnn_forward.1} parent=0 // pred_check_branch
    %43 = sbr.rel (0) target = $region41
  $region40: #{maxrnn_forward.1} parent=0 // pred_region
    _
  $region41: #{maxrnn_forward.1} parent=0 // pred_fallthru
    _
  // Predicated region
  $region42: #{maxrnn_forward.1} parent=0 // pred_check
    _
  $region43: #{maxrnn_forward.1} parent=0 // pred_check_branch
    %45 = sbr.rel (0) target = $region45
  $region44: #{maxrnn_forward.1} parent=0 // pred_region
    _
  $region45: #{maxrnn_forward.1} parent=0 // pred_fallthru
    _
  // Predicated region
  $region46: #{maxrnn_forward.1} parent=0 // pred_check
    _
  $region47: #{maxrnn_forward.1} parent=0 // pred_check_branch
    %47 = sbr.rel (0) target = $region49
  $region48: #{maxrnn_forward.1} parent=0 // pred_region
    _
  $region49: #{maxrnn_forward.1} parent=0 // pred_fallthru
    _
  // Predicated region
  $region50: #{maxrnn_forward.1} parent=0 // pred_check
    _
  $region51: #{maxrnn_forward.1} parent=0 // pred_check_branch
    %49 = sbr.rel (0) target = $region53
  $region52: #{maxrnn_forward.1} parent=0 // pred_region
    _
  $region53: #{maxrnn_forward.1} parent=0 // pred_fallthru
    _
  // Predicated region
  $region54: #{maxrnn_forward.1} parent=0 // pred_check
    _
  $region55: #{maxrnn_forward.1} parent=0 // pred_check_branch
    %51 = sbr.rel (0) target = $region57
  $region56: #{maxrnn_forward.1} parent=0 // pred_region
    _
  $region57: #{maxrnn_forward.1} parent=0 // pred_fallthru
    _
  // Predicated region
  $region58: #{maxrnn_forward.1} parent=0 // pred_check
    _
  $region59: #{maxrnn_forward.1} parent=0 // pred_check_branch
    %53 = sbr.rel (0) target = $region61
  $region60: #{maxrnn_forward.1} parent=0 // pred_region
    _
  $region61: #{maxrnn_forward.1} parent=0 // pred_fallthru
    _
  // Predicated region
  $region62: #{maxrnn_forward.1} parent=0 // pred_check
    _
  $region63: #{maxrnn_forward.1} parent=0 // pred_check_branch
    %55 = sbr.rel (0) target = $region65
  $region64: #{maxrnn_forward.1} parent=0 // pred_region
    _
  $region65: #{maxrnn_forward.1} parent=0 // pred_fallthru
    _
  // Predicated region
  $region66: #{maxrnn_forward.1} parent=0 // pred_check
    _
  $region67: #{maxrnn_forward.1} parent=0 // pred_check_branch
    %57 = sbr.rel (0) target = $region69
  $region68: #{maxrnn_forward.1} parent=0 // pred_region
    _
  $region69: #{maxrnn_forward.1} parent=0 // pred_fallthru
    _
  // Predicated region
  $region70: #{maxrnn_forward.1} parent=0 // pred_check
    _
  $region71: #{maxrnn_forward.1} parent=0 // pred_check_branch
    %59 = sbr.rel (0) target = $region73
  $region72: #{maxrnn_forward.1} parent=0 // pred_region
    _
  $region73: #{maxrnn_forward.1} parent=0 // pred_fallthru
    _
  // Predicated region
  $region74: #{maxrnn_forward.1} parent=0 // pred_check
    _
  $region75: #{maxrnn_forward.1} parent=0 // pred_check_branch
    %61 = sbr.rel (0) target = $region77
  $region76: #{maxrnn_forward.1} parent=0 // pred_region
    _
  $region77: #{maxrnn_forward.1} parent=0 // pred_fallthru
    _
  %v63 = vld [vmem:[%s0] sm:$0xff]
  %v64 = vld [vmem:[%s0 + $0x8] sm:$0xff]
  %v65 = vld [vmem:[%s0 + $0x10] sm:$0xff]
  %v66 = vld [vmem:[%s0 + $0x18] sm:$0xff]
  %v67 = vld [vmem:[%s0 + $0x20] sm:$0xff]
  %v68 = vld [vmem:[%s0 + $0x28] sm:$0xff]
  %v69 = vld [vmem:[%s0 + $0x30] sm:$0xff]
  %v70 = vld [vmem:[%s0 + $0x38] sm:$0xff]
  %v71 = vld [vmem:[%s0 + $0x40] sm:$0xff]
  %v72 = vld [vmem:[%s0 + $0x48] sm:$0xff]
  %v73 = vld [vmem:[%s0 + $0x50] sm:$0xff]
  %v74 = vld [vmem:[%s0 + $0x58] sm:$0xff]
  %v75 = vld [vmem:[%s0 + $0x60] sm:$0xff]
  %v76 = vld [vmem:[%s0 + $0x68] sm:$0xff]
  %v77 = vld [vmem:[%s0 + $0x70] sm:$0xff]
  %v78 = vld [vmem:[%s0 + $0x78] sm:$0xff]
  %v79 = vlaneseq
  %v80 = vand.u32 %v79, 127
  %81 = vset.pattern.permute.xlu0 0
  %82 = vperm.xlu0 %81, %v63
  %v83 = vpop.permute.xlu0 %82
  %84 = vset.pattern.permute.xlu0 0
  %85 = vperm.xlu0 %84, %v64
  %v86 = vpop.permute.xlu0 %85
  %87 = vset.pattern.permute.xlu0 0
  %88 = vperm.xlu0 %87, %v65
  %v89 = vpop.permute.xlu0 %88
  %90 = vset.pattern.permute.xlu0 0
  %91 = vperm.xlu0 %90, %v66
  %v92 = vpop.permute.xlu0 %91
  %93 = vset.pattern.permute.xlu0 0
  %94 = vperm.xlu0 %93, %v67
  %v95 = vpop.permute.xlu0 %94
  %96 = vset.pattern.permute.xlu0 0
  %97 = vperm.xlu0 %96, %v68
  %v98 = vpop.permute.xlu0 %97
  %99 = vset.pattern.permute.xlu0 0
  %100 = vperm.xlu0 %99, %v69
  %v101 = vpop.permute.xlu0 %100
  %102 = vset.pattern.permute.xlu0 0
  %103 = vperm.xlu0 %102, %v70
  %v104 = vpop.permute.xlu0 %103
  %105 = vset.pattern.permute.xlu0 0
  %106 = vperm.xlu0 %105, %v71
  %v107 = vpop.permute.xlu0 %106
  %108 = vset.pattern.permute.xlu0 0
  %109 = vperm.xlu0 %108, %v72
  %v110 = vpop.permute.xlu0 %109
  %111 = vset.pattern.permute.xlu0 0
  %112 = vperm.xlu0 %111, %v73
  %v113 = vpop.permute.xlu0 %112
  %114 = vset.pattern.permute.xlu0 0
  %115 = vperm.xlu0 %114, %v74
  %v116 = vpop.permute.xlu0 %115
  %117 = vset.pattern.permute.xlu0 0
  %118 = vperm.xlu0 %117, %v75
  %v119 = vpop.permute.xlu0 %118
  %120 = vset.pattern.permute.xlu0 0
  %121 = vperm.xlu0 %120, %v76
  %v122 = vpop.permute.xlu0 %121
  %123 = vset.pattern.permute.xlu0 0
  %124 = vperm.xlu0 %123, %v77
  %v125 = vpop.permute.xlu0 %124
  %126 = vset.pattern.permute.xlu0 0
  %127 = vperm.xlu0 %126, %v78
  %v128 = vpop.permute.xlu0 %127
  %vm129 = vcmp.eq.s32.totalorder %v80, %v83
  %vm130 = vcmp.eq.s32.totalorder %v80, %v86
  %vm131 = vcmp.eq.s32.totalorder %v80, %v89
  %vm132 = vcmp.eq.s32.totalorder %v80, %v92
  %vm133 = vcmp.eq.s32.totalorder %v80, %v95
  %vm134 = vcmp.eq.s32.totalorder %v80, %v98
  %vm135 = vcmp.eq.s32.totalorder %v80, %v101
  %vm136 = vcmp.eq.s32.totalorder %v80, %v104
  %vm137 = vcmp.eq.s32.totalorder %v80, %v107
  %vm138 = vcmp.eq.s32.totalorder %v80, %v110
  %vm139 = vcmp.eq.s32.totalorder %v80, %v113
  %vm140 = vcmp.eq.s32.totalorder %v80, %v116
  %vm141 = vcmp.eq.s32.totalorder %v80, %v119
  %vm142 = vcmp.eq.s32.totalorder %v80, %v122
  %vm143 = vcmp.eq.s32.totalorder %v80, %v125
  %vm144 = vcmp.eq.s32.totalorder %v80, %v128
  %v145 = vsel %vm129, 1, 0
  %v146 = vsel %vm130, 1, 0
  %v147 = vsel %vm131, 1, 0
  %v148 = vsel %vm132, 1, 0
  %v149 = vsel %vm133, 1, 0
  %v150 = vsel %vm134, 1, 0
  %v151 = vsel %vm135, 1, 0
  %v152 = vsel %vm136, 1, 0
  %v153 = vsel %vm137, 1, 0
  %v154 = vsel %vm138, 1, 0
  %v155 = vsel %vm139, 1, 0
  %v156 = vsel %vm140, 1, 0
  %v157 = vsel %vm141, 1, 0
  %v158 = vsel %vm142, 1, 0
  %v159 = vsel %vm143, 1, 0
  %v160 = vsel %vm144, 1, 0
  %v161 = vcvt.s32.f32 %v145
  %v162 = vcvt.s32.f32 %v146
  %v163 = vcvt.s32.f32 %v147
  %v164 = vcvt.s32.f32 %v148
  %v165 = vcvt.s32.f32 %v149
  %v166 = vcvt.s32.f32 %v150
  %v167 = vcvt.s32.f32 %v151
  %v168 = vcvt.s32.f32 %v152
  %v169 = vcvt.s32.f32 %v153
  %v170 = vcvt.s32.f32 %v154
  %v171 = vcvt.s32.f32 %v155
  %v172 = vcvt.s32.f32 %v156
  %v173 = vcvt.s32.f32 %v157
  %v174 = vcvt.s32.f32 %v158
  %v175 = vcvt.s32.f32 %v159
  %v176 = vcvt.s32.f32 %v160
  %v177 = vpack.c.bf16 %v162, %v161
  %v178 = vpack.c.bf16 %v164, %v163
  %v179 = vpack.c.bf16 %v166, %v165
  %v180 = vpack.c.bf16 %v168, %v167
  %v181 = vpack.c.bf16 %v170, %v169
  %v182 = vpack.c.bf16 %v172, %v171
  %v183 = vpack.c.bf16 %v174, %v173
  %v184 = vpack.c.bf16 %v176, %v175
  %v185 = vld [vmem:[%s1] sm:$0xf]
  %v186 = vld [vmem:[%s1 + $0x4] sm:$0xf]
  %v187 = vld [vmem:[%s1 + $0x8] sm:$0xf]
  %v188 = vld [vmem:[%s1 + $0xc] sm:$0xf]
  %v189 = vld [vmem:[%s1 + $0x10] sm:$0xf]
  %v190 = vld [vmem:[%s1 + $0x14] sm:$0xf]
  %v191 = vld [vmem:[%s1 + $0x18] sm:$0xf]
  %v192 = vld [vmem:[%s1 + $0x1c] sm:$0xf]
  %v193 = vld [vmem:[%s1 + $0x20] sm:$0xf]
  %v194 = vld [vmem:[%s1 + $0x24] sm:$0xf]
  %v195 = vld [vmem:[%s1 + $0x28] sm:$0xf]
  %v196 = vld [vmem:[%s1 + $0x2c] sm:$0xf]
  %v197 = vld [vmem:[%s1 + $0x30] sm:$0xf]
  %v198 = vld [vmem:[%s1 + $0x34] sm:$0xf]
  %v199 = vld [vmem:[%s1 + $0x38] sm:$0xf]
  %v200 = vld [vmem:[%s1 + $0x3c] sm:$0xf]
  %v217 = vunpack.c.l.b16 %v185
  %v218 = vunpack.c.l.b16 %v186
  %v219 = vunpack.c.l.b16 %v187
  %v220 = vunpack.c.l.b16 %v188
  %v221 = vunpack.c.l.b16 %v189
  %v222 = vunpack.c.l.b16 %v190
  %v223 = vunpack.c.l.b16 %v191
  %v224 = vunpack.c.l.b16 %v192
  %v225 = vunpack.c.l.b16 %v193
  %v226 = vunpack.c.l.b16 %v194
  %v227 = vunpack.c.l.b16 %v195
  %v228 = vunpack.c.l.b16 %v196
  %v229 = vunpack.c.l.b16 %v197
  %v230 = vunpack.c.l.b16 %v198
  %v231 = vunpack.c.l.b16 %v199
  %v232 = vunpack.c.l.b16 %v200
  %v233 = vpack.c.b16 %v218, %v217
  %v234 = vpack.c.b16 %v220, %v219
  %v235 = vpack.c.b16 %v222, %v221
  %v236 = vpack.c.b16 %v224, %v223
  %v237 = vpack.c.b16 %v226, %v225
  %v238 = vpack.c.b16 %v228, %v227
  %v239 = vpack.c.b16 %v230, %v229
  %v240 = vpack.c.b16 %v232, %v231
  %249 = vmatprep.subr.bf16.mxu0 0
  %250 = vmatpush1.bf16.msra.mxu0 %v233
  %251 = vmatprep.subr.bf16.mxu0 0
  %252 = vmatpush1.bf16.msra.mxu0 %v234
  %253 = vmatprep.subr.bf16.mxu0 0
  %254 = vmatpush1.bf16.msra.mxu0 %v235
  %255 = vmatprep.subr.bf16.mxu0 0
  %256 = vmatpush1.bf16.msra.mxu0 %v236
  %257 = vmatprep.subr.bf16.mxu0 0
  %258 = vmatpush1.bf16.msra.mxu0 %v237
  %259 = vmatprep.subr.bf16.mxu0 0
  %260 = vmatpush1.bf16.msra.mxu0 %v238
  %261 = vmatprep.subr.bf16.mxu0 0
  %262 = vmatpush1.bf16.msra.mxu0 %v239
  %263 = vmatprep.subr.bf16.mxu0 0
  %264 = vmatpush1.bf16.msra.mxu0 %v240
  %265 = vmatprep.subr.bf16.mxu0 0
  %266 = vmatpush1.bf16.msra.mxu0 0
  %267 = vmatprep.subr.bf16.mxu0 0
  %268 = vmatpush1.bf16.msra.mxu0 0
  %269 = vmatprep.subr.bf16.mxu0 0
  %270 = vmatpush1.bf16.msra.mxu0 0
  %271 = vmatprep.subr.bf16.mxu0 0
  %272 = vmatpush1.bf16.msra.mxu0 0
  %273 = vmatprep.subr.bf16.mxu0 0
  %274 = vmatpush1.bf16.msra.mxu0 0
  %275 = vmatprep.subr.bf16.mxu0 0
  %276 = vmatpush1.bf16.msra.mxu0 0
  %277 = vmatprep.subr.bf16.mxu0 0
  %278 = vmatpush1.bf16.msra.mxu0 0
  %279 = vmatprep.subr.bf16.mxu0 0
  %280 = vmatpush1.bf16.msra.mxu0 0
  %281 = vmatprep.mubr.bf16.mxu0 0
  %282 = vmatmul.mubr.bf16.gmra.mrb[0].mxu0 %v177
  %v283 = vpop.f32.mrb[0].mxu0
  %v284 = vadd.f32 0.0, %v283
  %v285 = vpop.f32.mrb[0].mxu0
  %v286 = vpop.f32.mrb[0].mxu0
  %v287 = vadd.f32 0.0, %v286
  %v288 = vpop.f32.mrb[0].mxu0
  %289 = vmatprep.mubr.bf16.mxu0 0
  %290 = vmatmul.mubr.bf16.gmra.mrb[0].mxu0 %v178
  %v291 = vpop.f32.mrb[0].mxu0
  %v292 = vadd.f32 0.0, %v291
  %v293 = vpop.f32.mrb[0].mxu0
  %v294 = vpop.f32.mrb[0].mxu0
  %v295 = vadd.f32 0.0, %v294
  %v296 = vpop.f32.mrb[0].mxu0
  %297 = vmatprep.mubr.bf16.mxu0 0
  %298 = vmatmul.mubr.bf16.gmra.mrb[0].mxu0 %v179
  %v299 = vpop.f32.mrb[0].mxu0
  %v300 = vadd.f32 0.0, %v299
  %v301 = vpop.f32.mrb[0].mxu0
  %v302 = vpop.f32.mrb[0].mxu0
  %v303 = vadd.f32 0.0, %v302
  %v304 = vpop.f32.mrb[0].mxu0
  %305 = vmatprep.mubr.bf16.mxu0 0
  %306 = vmatmul.mubr.bf16.gmra.mrb[0].mxu0 %v180
  %v307 = vpop.f32.mrb[0].mxu0
  %v308 = vadd.f32 0.0, %v307
  %v309 = vpop.f32.mrb[0].mxu0
  %v310 = vpop.f32.mrb[0].mxu0
  %v311 = vadd.f32 0.0, %v310
  %v312 = vpop.f32.mrb[0].mxu0
  %313 = vmatprep.mubr.bf16.mxu0 0
  %314 = vmatmul.mubr.bf16.gmra.mrb[0].mxu0 %v181
  %v315 = vpop.f32.mrb[0].mxu0
  %v316 = vadd.f32 0.0, %v315
  %v317 = vpop.f32.mrb[0].mxu0
  %v318 = vpop.f32.mrb[0].mxu0
  %v319 = vadd.f32 0.0, %v318
  %v320 = vpop.f32.mrb[0].mxu0
  %321 = vmatprep.mubr.bf16.mxu0 0
  %322 = vmatmul.mubr.bf16.gmra.mrb[0].mxu0 %v182
  %v323 = vpop.f32.mrb[0].mxu0
  %v324 = vadd.f32 0.0, %v323
  %v325 = vpop.f32.mrb[0].mxu0
  %v326 = vpop.f32.mrb[0].mxu0
  %v327 = vadd.f32 0.0, %v326
  %v328 = vpop.f32.mrb[0].mxu0
  %329 = vmatprep.mubr.bf16.mxu0 0
  %330 = vmatmul.mubr.bf16.gmra.mrb[0].mxu0 %v183
  %v331 = vpop.f32.mrb[0].mxu0
  %v332 = vadd.f32 0.0, %v331
  %v333 = vpop.f32.mrb[0].mxu0
  %v334 = vpop.f32.mrb[0].mxu0
  %v335 = vadd.f32 0.0, %v334
  %v336 = vpop.f32.mrb[0].mxu0
  %337 = vmatprep.mubr.bf16.mxu0 0
  %338 = vmatmul.mubr.bf16.gmra.mrb[0].mxu0 %v184
  %v339 = vpop.f32.mrb[0].mxu0
  %v340 = vadd.f32 0.0, %v339
  %v341 = vpop.f32.mrb[0].mxu0
  %v342 = vpop.f32.mrb[0].mxu0
  %v343 = vadd.f32 0.0, %v342
  %v344 = vpop.f32.mrb[0].mxu0
  %345 = vdwg.mxu0
  %v346 = vpack.c.bf16 %v287, %v284
  %v347 = vpack.c.bf16 %v295, %v292
  %v348 = vpack.c.bf16 %v303, %v300
  %v349 = vpack.c.bf16 %v311, %v308
  %v350 = vpack.c.bf16 %v319, %v316
  %v351 = vpack.c.bf16 %v327, %v324
  %v352 = vpack.c.bf16 %v335, %v332
  %v353 = vpack.c.bf16 %v343, %v340
  %v354 = vld [vmem:[%s2] sm:$0xf]
  %v355 = vld [vmem:[%s2 + $0x4] sm:$0xf]
  %v356 = vld [vmem:[%s2 + $0x8] sm:$0xf]
  %v357 = vld [vmem:[%s2 + $0xc] sm:$0xf]
  %v358 = vld [vmem:[%s5] sm:$0x1]
  %v360 = vlaneseq
  %v361 = vshrl.u32 %v360, 7
  %v362 = vsub.s32 0, %v361
  %v363 = vrot.slane %v358, %v362
  %v369 = vunpack.c.l.b16 %v354
  %v370 = vunpack.c.l.b16 %v355
  %v371 = vunpack.c.l.b16 %v356
  %v372 = vunpack.c.l.b16 %v357
  %v373 = vpack.c.b16 %v370, %v369
  %v374 = vpack.c.b16 %v372, %v371
  %vm377 = vcmask 261120
  %v379 = vsel %vm377, %v346, 0
  %v382 = vsel %vm377, %v347, 0
  %v385 = vsel %vm377, %v348, 0
  %v388 = vsel %vm377, %v349, 0
  %390 = vmatprep.subr.bf16.mxu0 0
  %391 = vmatpush1.bf16.msra.mxu0 %v373
  %392 = vmatprep.subr.bf16.mxu0 0
  %393 = vmatpush1.bf16.msra.mxu0 %v374
  %394 = vmatprep.subr.bf16.mxu0 0
  %395 = vmatpush1.bf16.msra.mxu0 0
  %396 = vmatprep.subr.bf16.mxu0 0
  %397 = vmatpush1.bf16.msra.mxu0 0
  %398 = vmatprep.subr.bf16.mxu0 0
  %399 = vmatpush1.bf16.msra.mxu0 0
  %400 = vmatprep.subr.bf16.mxu0 0
  %401 = vmatpush1.bf16.msra.mxu0 0
  %402 = vmatprep.subr.bf16.mxu0 0
  %403 = vmatpush1.bf16.msra.mxu0 0
  %404 = vmatprep.subr.bf16.mxu0 0
  %405 = vmatpush1.bf16.msra.mxu0 0
  %406 = vmatprep.subr.bf16.mxu0 0
  %407 = vmatpush1.bf16.msra.mxu0 0
  %408 = vmatprep.subr.bf16.mxu0 0
  %409 = vmatpush1.bf16.msra.mxu0 0
  %410 = vmatprep.subr.bf16.mxu0 0
  %411 = vmatpush1.bf16.msra.mxu0 0
  %412 = vmatprep.subr.bf16.mxu0 0
  %413 = vmatpush1.bf16.msra.mxu0 0
  %414 = vmatprep.subr.bf16.mxu0 0
  %415 = vmatpush1.bf16.msra.mxu0 0
  %416 = vmatprep.subr.bf16.mxu0 0
  %417 = vmatpush1.bf16.msra.mxu0 0
  %418 = vmatprep.subr.bf16.mxu0 0
  %419 = vmatpush1.bf16.msra.mxu0 0
  %420 = vmatprep.subr.bf16.mxu0 0
  %421 = vmatpush1.bf16.msra.mxu0 0
  %422 = vmatprep.mubr.bf16.mxu0 0
  %423 = vmatmul.mubr.bf16.gmra.mrb[0].mxu0 %v379
  %v424 = vpop.f32.mrb[0].mxu0
  %v425 = vadd.f32 %v363, %v424
  %v426 = vpop.f32.mrb[0].mxu0
  %v427 = vpop.f32.mrb[0].mxu0
  %v428 = vadd.f32 %v363, %v427
  %v429 = vpop.f32.mrb[0].mxu0
  %430 = vmatprep.mubr.bf16.mxu0 0
  %431 = vmatmul.mubr.bf16.gmra.mrb[0].mxu0 %v382
  %v432 = vpop.f32.mrb[0].mxu0
  %v433 = vadd.f32 %v363, %v432
  %v434 = vpop.f32.mrb[0].mxu0
  %v435 = vpop.f32.mrb[0].mxu0
  %v436 = vadd.f32 %v363, %v435
  %v437 = vpop.f32.mrb[0].mxu0
  %438 = vmatprep.mubr.bf16.mxu0 0
  %439 = vmatmul.mubr.bf16.gmra.mrb[0].mxu0 %v385
  %v440 = vpop.f32.mrb[0].mxu0
  %v441 = vadd.f32 %v363, %v440
  %v442 = vpop.f32.mrb[0].mxu0
  %v443 = vpop.f32.mrb[0].mxu0
  %v444 = vadd.f32 %v363, %v443
  %v445 = vpop.f32.mrb[0].mxu0
  %446 = vmatprep.mubr.bf16.mxu0 0
  %447 = vmatmul.mubr.bf16.gmra.mrb[0].mxu0 %v388
  %v448 = vpop.f32.mrb[0].mxu0
  %v449 = vadd.f32 %v363, %v448
  %v450 = vpop.f32.mrb[0].mxu0
  %v451 = vpop.f32.mrb[0].mxu0
  %v452 = vadd.f32 %v363, %v451
  %v453 = vpop.f32.mrb[0].mxu0
  %454 = vdwg.mxu0
  %v455 = vld [vmem:[%s3] sm:$0xf]
  %v456 = vld [vmem:[%s3 + $0x4] sm:$0xf]
  %v457 = vld [vmem:[%s3 + $0x8] sm:$0xf]
  %v458 = vld [vmem:[%s3 + $0xc] sm:$0xf]
  %v459 = vld [vmem:[%s6] sm:$0x1]
  %v461 = vlaneseq
  %v462 = vshrl.u32 %v461, 7
  %v463 = vsub.s32 0, %v462
  %v464 = vrot.slane %v459, %v463
  %v470 = vunpack.c.l.b16 %v455
  %v471 = vunpack.c.l.b16 %v456
  %v472 = vunpack.c.l.b16 %v457
  %v473 = vunpack.c.l.b16 %v458
  %v474 = vpack.c.b16 %v471, %v470
  %v475 = vpack.c.b16 %v473, %v472
  %v479 = vsel %vm377, %v350, 0
  %v482 = vsel %vm377, %v351, 0
  %v485 = vsel %vm377, %v352, 0
  %v488 = vsel %vm377, %v353, 0
  %490 = vmatprep.subr.bf16.mxu0 0
  %491 = vmatpush1.bf16.msra.mxu0 %v474
  %492 = vmatprep.subr.bf16.mxu0 0
  %493 = vmatpush1.bf16.msra.mxu0 %v475
  %494 = vmatprep.subr.bf16.mxu0 0
  %495 = vmatpush1.bf16.msra.mxu0 0
  %496 = vmatprep.subr.bf16.mxu0 0
  %497 = vmatpush1.bf16.msra.mxu0 0
  %498 = vmatprep.subr.bf16.mxu0 0
  %499 = vmatpush1.bf16.msra.mxu0 0
  %500 = vmatprep.subr.bf16.mxu0 0
  %501 = vmatpush1.bf16.msra.mxu0 0
  %502 = vmatprep.subr.bf16.mxu0 0
  %503 = vmatpush1.bf16.msra.mxu0 0
  %504 = vmatprep.subr.bf16.mxu0 0
  %505 = vmatpush1.bf16.msra.mxu0 0
  %506 = vmatprep.subr.bf16.mxu0 0
  %507 = vmatpush1.bf16.msra.mxu0 0
  %508 = vmatprep.subr.bf16.mxu0 0
  %509 = vmatpush1.bf16.msra.mxu0 0
  %510 = vmatprep.subr.bf16.mxu0 0
  %511 = vmatpush1.bf16.msra.mxu0 0
  %512 = vmatprep.subr.bf16.mxu0 0
  %513 = vmatpush1.bf16.msra.mxu0 0
  %514 = vmatprep.subr.bf16.mxu0 0
  %515 = vmatpush1.bf16.msra.mxu0 0
  %516 = vmatprep.subr.bf16.mxu0 0
  %517 = vmatpush1.bf16.msra.mxu0 0
  %518 = vmatprep.subr.bf16.mxu0 0
  %519 = vmatpush1.bf16.msra.mxu0 0
  %520 = vmatprep.subr.bf16.mxu0 0
  %521 = vmatpush1.bf16.msra.mxu0 0
  %522 = vmatprep.mubr.bf16.mxu0 0
  %523 = vmatmul.mubr.bf16.gmra.mrb[0].mxu0 %v479
  %v524 = vpop.f32.mrb[0].mxu0
  %v525 = vadd.f32 %v464, %v524
  %v526 = vpop.f32.mrb[0].mxu0
  %v527 = vpop.f32.mrb[0].mxu0
  %v528 = vadd.f32 %v464, %v527
  %v529 = vpop.f32.mrb[0].mxu0
  %530 = vmatprep.mubr.bf16.mxu0 0
  %531 = vmatmul.mubr.bf16.gmra.mrb[0].mxu0 %v482
  %v532 = vpop.f32.mrb[0].mxu0
  %v533 = vadd.f32 %v464, %v532
  %v534 = vpop.f32.mrb[0].mxu0
  %v535 = vpop.f32.mrb[0].mxu0
  %v536 = vadd.f32 %v464, %v535
  %v537 = vpop.f32.mrb[0].mxu0
  %538 = vmatprep.mubr.bf16.mxu0 0
  %539 = vmatmul.mubr.bf16.gmra.mrb[0].mxu0 %v485
  %v540 = vpop.f32.mrb[0].mxu0
  %v541 = vadd.f32 %v464, %v540
  %v542 = vpop.f32.mrb[0].mxu0
  %v543 = vpop.f32.mrb[0].mxu0
  %v544 = vadd.f32 %v464, %v543
  %v545 = vpop.f32.mrb[0].mxu0
  %546 = vmatprep.mubr.bf16.mxu0 0
  %547 = vmatmul.mubr.bf16.gmra.mrb[0].mxu0 %v488
  %v548 = vpop.f32.mrb[0].mxu0
  %v549 = vadd.f32 %v464, %v548
  %v550 = vpop.f32.mrb[0].mxu0
  %v551 = vpop.f32.mrb[0].mxu0
  %v552 = vadd.f32 %v464, %v551
  %v553 = vpop.f32.mrb[0].mxu0
  %554 = vdwg.mxu0
  %v555 = vld [vmem:[%s4] sm:$0xf]
  %v556 = vld [vmem:[%s4 + $0x4] sm:$0xf]
  %v557 = vld [vmem:[%s4 + $0x8] sm:$0xf]
  %v558 = vld [vmem:[%s4 + $0xc] sm:$0xf]
  %v559 = vld [vmem:[%s4 + $0x10] sm:$0xf]
  %v560 = vld [vmem:[%s4 + $0x14] sm:$0xf]
  %v561 = vld [vmem:[%s4 + $0x18] sm:$0xf]
  %v562 = vld [vmem:[%s4 + $0x1c] sm:$0xf]
  %v563 = vlaneseq
  %v564 = vshrl.u32 %v563, 7
  %v565 = vadd.s32 %v564, 8
  %vm566 = vcmp.lt.s32.totalorder %v564, 8
  %vm567 = vcmp.lt.s32.totalorder %v565, 8
  %vm568 = vcmp.lt.s32.totalorder %v80, 32
  %vm569 = vmxor %vm566, %vm568
  %vm570 = vmxor %vm567, %vm568
  %vm571 = vmxor %vm569, 1
  %vm572 = vmxor %vm570, 1
  %v573 = vsel %vm571, 1, 0
  %v574 = vsel %vm572, 1, 0
  %v575 = vcvt.s32.f32 %v573
  %v576 = vcvt.s32.f32 %v574
  %v577 = vmul.f32 %v575, 0.0
  %v578 = vmul.f32 %v576, 0.0
  %v579 = vpack.c.bf16 %v578, %v577
  %v588 = vunpack.c.l.b16 %v555
  %v589 = vunpack.c.l.b16 %v556
  %v590 = vunpack.c.l.b16 %v557
  %v591 = vunpack.c.l.b16 %v558
  %v592 = vunpack.c.l.b16 %v559
  %v593 = vunpack.c.l.b16 %v560
  %v594 = vunpack.c.l.b16 %v561
  %v595 = vunpack.c.l.b16 %v562
  %v596 = vpack.c.b16 %v589, %v588
  %v597 = vpack.c.b16 %v591, %v590
  %v598 = vpack.c.b16 %v593, %v592
  %v599 = vpack.c.b16 %v595, %v594
  %vm604 = vcmask 523264
  %v606 = vsel %vm604, %v579, 0
  %608 = vmatprep.subr.bf16.mxu0 0
  %609 = vmatpush1.bf16.msra.mxu0 %v596
  %610 = vmatprep.subr.bf16.mxu0 0
  %611 = vmatpush1.bf16.msra.mxu0 %v597
  %612 = vmatprep.subr.bf16.mxu0 0
  %613 = vmatpush1.bf16.msra.mxu0 %v598
  %614 = vmatprep.subr.bf16.mxu0 0
  %615 = vmatpush1.bf16.msra.mxu0 %v599
  %616 = vmatprep.subr.bf16.mxu0 0
  %617 = vmatpush1.bf16.msra.mxu0 0
  %618 = vmatprep.subr.bf16.mxu0 0
  %619 = vmatpush1.bf16.msra.mxu0 0
  %620 = vmatprep.subr.bf16.mxu0 0
  %621 = vmatpush1.bf16.msra.mxu0 0
  %622 = vmatprep.subr.bf16.mxu0 0
  %623 = vmatpush1.bf16.msra.mxu0 0
  %624 = vmatprep.subr.bf16.mxu0 0
  %625 = vmatpush1.bf16.msra.mxu0 0
  %626 = vmatprep.subr.bf16.mxu0 0
  %627 = vmatpush1.bf16.msra.mxu0 0
  %628 = vmatprep.subr.bf16.mxu0 0
  %629 = vmatpush1.bf16.msra.mxu0 0
  %630 = vmatprep.subr.bf16.mxu0 0
  %631 = vmatpush1.bf16.msra.mxu0 0
  %632 = vmatprep.subr.bf16.mxu0 0
  %633 = vmatpush1.bf16.msra.mxu0 0
  %634 = vmatprep.subr.bf16.mxu0 0
  %635 = vmatpush1.bf16.msra.mxu0 0
  %636 = vmatprep.subr.bf16.mxu0 0
  %637 = vmatpush1.bf16.msra.mxu0 0
  %638 = vmatprep.subr.bf16.mxu0 0
  %639 = vmatpush1.bf16.msra.mxu0 0
  %640 = vmatprep.mubr.bf16.mxu0 0
  %641 = vmatmul.mubr.bf16.gmra.mrb[0].mxu0 %v606
  %v642 = vpop.f32.mrb[0].mxu0
  %v643 = vadd.f32 0.0, %v642
  %v644 = vpop.f32.mrb[0].mxu0
  %v645 = vpop.f32.mrb[0].mxu0
  %v646 = vadd.f32 0.0, %v645
  %v647 = vpop.f32.mrb[0].mxu0
  %648 = vdwg.mxu0
  %v649 = vadd.f32 %v425, %v643
  %v650 = vadd.f32 %v525, %v646
  %v651 = vxor.u32 %v649, 2147483648
  %v652 = vxor.u32 %v650, 2147483648
  %v653 = vmul.f32 %v651, 1.442695
  %v654 = vpow.pop %v653
  %v655 = vmul.f32 %v652, 1.442695
  %v656 = vpow.pop %v655
  %v657 = vadd.f32 %v654, 1.0
  %v658 = vadd.f32 %v656, 1.0
  %v659 = vrcp.pop %v657
  %v660 = vmul.f32 1.0, %v659
  %v661 = vrcp.pop %v658
  %v662 = vmul.f32 1.0, %v661
  %v663 = vtanh.pop %v649
  %v664 = vtanh.pop %v650
  %v665 = vmul.f32 %v660, 0.0
  %v666 = vmul.f32 %v662, 0.0
  %669 = vrot.lane.b32.xlu0 %v663, 32
  %v670 = vpop.permute.xlu0 %669
  %671 = vrot.lane.b32.xlu0 %v664, 32
  %v672 = vpop.permute.xlu0 %671
  %v675 = vmul.f32 %v660, %v670
  %v676 = vmul.f32 %v662, %v672
  %679 = vrot.lane.b32.xlu0 %v675, 32
  %v680 = vpop.permute.xlu0 %679
  %681 = vrot.lane.b32.xlu0 %v676, 32
  %v682 = vpop.permute.xlu0 %681
  %v685 = vadd.f32 %v665, %v680
  %v686 = vadd.f32 %v666, %v682
  %v687 = vtanh.pop %v685
  %v688 = vtanh.pop %v686
  %691 = vrot.lane.b32.xlu0 %v687, 32
  %v692 = vpop.permute.xlu0 %691
  %693 = vrot.lane.b32.xlu0 %v688, 32
  %v694 = vpop.permute.xlu0 %693
  %v697 = vmul.f32 %v660, %v692
  %v698 = vmul.f32 %v662, %v694
  %701 = vrot.lane.b32.xlu0 %v697, 64
  %v702 = vpop.permute.xlu0 %701
  %703 = vrot.lane.b32.xlu0 %v698, 64
  %v704 = vpop.permute.xlu0 %703
  %707 = vrot.lane.b32.xlu0 %v697, 96
  %v708 = vpop.permute.xlu0 %707
  %709 = vrot.lane.b32.xlu0 %v698, 96
  %v710 = vpop.permute.xlu0 %709
  %v713 = vsel %vm377, %v702, %v708
  %v714 = vsel %vm377, %v704, %v710
  %v715 = vmul.f32 %v713, %v575
  %v716 = vmul.f32 %v714, %v576
  %v717 = vpack.c.bf16 %v716, %v715
  %v719 = vsel %vm604, %v717, 0
  %721 = vmatprep.subr.bf16.mxu0 0
  %722 = vmatpush1.bf16.msra.mxu0 %v596
  %723 = vmatprep.subr.bf16.mxu0 0
  %724 = vmatpush1.bf16.msra.mxu0 %v597
  %725 = vmatprep.subr.bf16.mxu0 0
  %726 = vmatpush1.bf16.msra.mxu0 %v598
  %727 = vmatprep.subr.bf16.mxu0 0
  %728 = vmatpush1.bf16.msra.mxu0 %v599
  %729 = vmatprep.subr.bf16.mxu0 0
  %730 = vmatpush1.bf16.msra.mxu0 0
  %731 = vmatprep.subr.bf16.mxu0 0
  %732 = vmatpush1.bf16.msra.mxu0 0
  %733 = vmatprep.subr.bf16.mxu0 0
  %734 = vmatpush1.bf16.msra.mxu0 0
  %735 = vmatprep.subr.bf16.mxu0 0
  %736 = vmatpush1.bf16.msra.mxu0 0
  %737 = vmatprep.subr.bf16.mxu0 0
  %738 = vmatpush1.bf16.msra.mxu0 0
  %739 = vmatprep.subr.bf16.mxu0 0
  %740 = vmatpush1.bf16.msra.mxu0 0
  %741 = vmatprep.subr.bf16.mxu0 0
  %742 = vmatpush1.bf16.msra.mxu0 0
  %743 = vmatprep.subr.bf16.mxu0 0
  %744 = vmatpush1.bf16.msra.mxu0 0
  %745 = vmatprep.subr.bf16.mxu0 0
  %746 = vmatpush1.bf16.msra.mxu0 0
  %747 = vmatprep.subr.bf16.mxu0 0
  %748 = vmatpush1.bf16.msra.mxu0 0
  %749 = vmatprep.subr.bf16.mxu0 0
  %750 = vmatpush1.bf16.msra.mxu0 0
  %751 = vmatprep.subr.bf16.mxu0 0
  %752 = vmatpush1.bf16.msra.mxu0 0
  %753 = vmatprep.mubr.bf16.mxu0 0
  %754 = vmatmul.mubr.bf16.gmra.mrb[0].mxu0 %v719
  %v755 = vpop.f32.mrb[0].mxu0
  %v756 = vadd.f32 0.0, %v755
  %v757 = vpop.f32.mrb[0].mxu0
  %v758 = vpop.f32.mrb[0].mxu0
  %v759 = vadd.f32 0.0, %v758
  %v760 = vpop.f32.mrb[0].mxu0
  %761 = vdwg.mxu0
  %v762 = vadd.f32 %v428, %v756
  %v763 = vadd.f32 %v528, %v759
  %v764 = vxor.u32 %v762, 2147483648
  %v765 = vxor.u32 %v763, 2147483648
  %v766 = vmul.f32 %v764, 1.442695
  %v767 = vpow.pop %v766
  %v768 = vmul.f32 %v765, 1.442695
  %v769 = vpow.pop %v768
  %v770 = vadd.f32 %v767, 1.0
  %v771 = vadd.f32 %v769, 1.0
  %v772 = vrcp.pop %v770
  %v773 = vmul.f32 1.0, %v772
  %v774 = vrcp.pop %v771
  %v775 = vmul.f32 1.0, %v774
  %v776 = vtanh.pop %v762
  %v777 = vtanh.pop %v763
  %v778 = vmul.f32 %v773, %v685
  %v779 = vmul.f32 %v775, %v686
  %782 = vrot.lane.b32.xlu0 %v776, 32
  %v783 = vpop.permute.xlu0 %782
  %784 = vrot.lane.b32.xlu0 %v777, 32
  %v785 = vpop.permute.xlu0 %784
  %v788 = vmul.f32 %v773, %v783
  %v789 = vmul.f32 %v775, %v785
  %792 = vrot.lane.b32.xlu0 %v788, 32
  %v793 = vpop.permute.xlu0 %792
  %794 = vrot.lane.b32.xlu0 %v789, 32
  %v795 = vpop.permute.xlu0 %794
  %v798 = vadd.f32 %v778, %v793
  %v799 = vadd.f32 %v779, %v795
  %v800 = vtanh.pop %v798
  %v801 = vtanh.pop %v799
  %804 = vrot.lane.b32.xlu0 %v800, 32
  %v805 = vpop.permute.xlu0 %804
  %806 = vrot.lane.b32.xlu0 %v801, 32
  %v807 = vpop.permute.xlu0 %806
  %v810 = vmul.f32 %v773, %v805
  %v811 = vmul.f32 %v775, %v807
  %v812 = vmax.f32 %v697, %v810
  %v813 = vmax.f32 %v698, %v811
  %816 = vrot.lane.b32.xlu0 %v810, 64
  %v817 = vpop.permute.xlu0 %816
  %818 = vrot.lane.b32.xlu0 %v811, 64
  %v819 = vpop.permute.xlu0 %818
  %822 = vrot.lane.b32.xlu0 %v810, 96
  %v823 = vpop.permute.xlu0 %822
  %824 = vrot.lane.b32.xlu0 %v811, 96
  %v825 = vpop.permute.xlu0 %824
  %v828 = vsel %vm377, %v817, %v823
  %v829 = vsel %vm377, %v819, %v825
  %v830 = vmul.f32 %v828, %v575
  %v831 = vmul.f32 %v829, %v576
  %v832 = vpack.c.bf16 %v831, %v830
  %v834 = vsel %vm604, %v832, 0
  %836 = vmatprep.subr.bf16.mxu0 0
  %837 = vmatpush1.bf16.msra.mxu0 %v596
  %838 = vmatprep.subr.bf16.mxu0 0
  %839 = vmatpush1.bf16.msra.mxu0 %v597
  %840 = vmatprep.subr.bf16.mxu0 0
  %841 = vmatpush1.bf16.msra.mxu0 %v598
  %842 = vmatprep.subr.bf16.mxu0 0
  %843 = vmatpush1.bf16.msra.mxu0 %v599
  %844 = vmatprep.subr.bf16.mxu0 0
  %845 = vmatpush1.bf16.msra.mxu0 0
  %846 = vmatprep.subr.bf16.mxu0 0
  %847 = vmatpush1.bf16.msra.mxu0 0
  %848 = vmatprep.subr.bf16.mxu0 0
  %849 = vmatpush1.bf16.msra.mxu0 0
  %850 = vmatprep.subr.bf16.mxu0 0
  %851 = vmatpush1.bf16.msra.mxu0 0
  %852 = vmatprep.subr.bf16.mxu0 0
  %853 = vmatpush1.bf16.msra.mxu0 0
  %854 = vmatprep.subr.bf16.mxu0 0
  %855 = vmatpush1.bf16.msra.mxu0 0
  %856 = vmatprep.subr.bf16.mxu0 0
  %857 = vmatpush1.bf16.msra.mxu0 0
  %858 = vmatprep.subr.bf16.mxu0 0
  %859 = vmatpush1.bf16.msra.mxu0 0
  %860 = vmatprep.subr.bf16.mxu0 0
  %861 = vmatpush1.bf16.msra.mxu0 0
  %862 = vmatprep.subr.bf16.mxu0 0
  %863 = vmatpush1.bf16.msra.mxu0 0
  %864 = vmatprep.subr.bf16.mxu0 0
  %865 = vmatpush1.bf16.msra.mxu0 0
  %866 = vmatprep.subr.bf16.mxu0 0
  %867 = vmatpush1.bf16.msra.mxu0 0
  %868 = vmatprep.mubr.bf16.mxu0 0
  %869 = vmatmul.mubr.bf16.gmra.mrb[0].mxu0 %v834
  %v870 = vpop.f32.mrb[0].mxu0
  %v871 = vadd.f32 0.0, %v870
  %v872 = vpop.f32.mrb[0].mxu0
  %v873 = vpop.f32.mrb[0].mxu0
  %v874 = vadd.f32 0.0, %v873
  %v875 = vpop.f32.mrb[0].mxu0
  %876 = vdwg.mxu0
  %v877 = vadd.f32 %v433, %v871
  %v878 = vadd.f32 %v533, %v874
  %v879 = vxor.u32 %v877, 2147483648
  %v880 = vxor.u32 %v878, 2147483648
  %v881 = vmul.f32 %v879, 1.442695
  %v882 = vpow.pop %v881
  %v883 = vmul.f32 %v880, 1.442695
  %v884 = vpow.pop %v883
  %v885 = vadd.f32 %v882, 1.0
  %v886 = vadd.f32 %v884, 1.0
  %v887 = vrcp.pop %v885
  %v888 = vmul.f32 1.0, %v887
  %v889 = vrcp.pop %v886
  %v890 = vmul.f32 1.0, %v889
  %v891 = vtanh.pop %v877
  %v892 = vtanh.pop %v878
  %v893 = vmul.f32 %v888, %v798
  %v894 = vmul.f32 %v890, %v799
  %897 = vrot.lane.b32.xlu0 %v891, 32
  %v898 = vpop.permute.xlu0 %897
  %899 = vrot.lane.b32.xlu0 %v892, 32
  %v900 = vpop.permute.xlu0 %899
  %v903 = vmul.f32 %v888, %v898
  %v904 = vmul.f32 %v890, %v900
  %907 = vrot.lane.b32.xlu0 %v903, 32
  %v908 = vpop.permute.xlu0 %907
  %909 = vrot.lane.b32.xlu0 %v904, 32
  %v910 = vpop.permute.xlu0 %909
  %v913 = vadd.f32 %v893, %v908
  %v914 = vadd.f32 %v894, %v910
  %v915 = vtanh.pop %v913
  %v916 = vtanh.pop %v914
  %919 = vrot.lane.b32.xlu0 %v915, 32
  %v920 = vpop.permute.xlu0 %919
  %921 = vrot.lane.b32.xlu0 %v916, 32
  %v922 = vpop.permute.xlu0 %921
  %v925 = vmul.f32 %v888, %v920
  %v926 = vmul.f32 %v890, %v922
  %v927 = vmax.f32 %v812, %v925
  %v928 = vmax.f32 %v813, %v926
  %931 = vrot.lane.b32.xlu0 %v925, 64
  %v932 = vpop.permute.xlu0 %931
  %933 = vrot.lane.b32.xlu0 %v926, 64
  %v934 = vpop.permute.xlu0 %933
  %937 = vrot.lane.b32.xlu0 %v925, 96
  %v938 = vpop.permute.xlu0 %937
  %939 = vrot.lane.b32.xlu0 %v926, 96
  %v940 = vpop.permute.xlu0 %939
  %v943 = vsel %vm377, %v932, %v938
  %v944 = vsel %vm377, %v934, %v940
  %v945 = vmul.f32 %v943, %v575
  %v946 = vmul.f32 %v944, %v576
  %v947 = vpack.c.bf16 %v946, %v945
  %v949 = vsel %vm604, %v947, 0
  %951 = vmatprep.subr.bf16.mxu0 0
  %952 = vmatpush1.bf16.msra.mxu0 %v596
  %953 = vmatprep.subr.bf16.mxu0 0
  %954 = vmatpush1.bf16.msra.mxu0 %v597
  %955 = vmatprep.subr.bf16.mxu0 0
  %956 = vmatpush1.bf16.msra.mxu0 %v598
  %957 = vmatprep.subr.bf16.mxu0 0
  %958 = vmatpush1.bf16.msra.mxu0 %v599
  %959 = vmatprep.subr.bf16.mxu0 0
  %960 = vmatpush1.bf16.msra.mxu0 0
  %961 = vmatprep.subr.bf16.mxu0 0
  %962 = vmatpush1.bf16.msra.mxu0 0
  %963 = vmatprep.subr.bf16.mxu0 0
  %964 = vmatpush1.bf16.msra.mxu0 0
  %965 = vmatprep.subr.bf16.mxu0 0
  %966 = vmatpush1.bf16.msra.mxu0 0
  %967 = vmatprep.subr.bf16.mxu0 0
  %968 = vmatpush1.bf16.msra.mxu0 0
  %969 = vmatprep.subr.bf16.mxu0 0
  %970 = vmatpush1.bf16.msra.mxu0 0
  %971 = vmatprep.subr.bf16.mxu0 0
  %972 = vmatpush1.bf16.msra.mxu0 0
  %973 = vmatprep.subr.bf16.mxu0 0
  %974 = vmatpush1.bf16.msra.mxu0 0
  %975 = vmatprep.subr.bf16.mxu0 0
  %976 = vmatpush1.bf16.msra.mxu0 0
  %977 = vmatprep.subr.bf16.mxu0 0
  %978 = vmatpush1.bf16.msra.mxu0 0
  %979 = vmatprep.subr.bf16.mxu0 0
  %980 = vmatpush1.bf16.msra.mxu0 0
  %981 = vmatprep.subr.bf16.mxu0 0
  %982 = vmatpush1.bf16.msra.mxu0 0
  %983 = vmatprep.mubr.bf16.mxu0 0
  %984 = vmatmul.mubr.bf16.gmra.mrb[0].mxu0 %v949
  %v985 = vpop.f32.mrb[0].mxu0
  %v986 = vadd.f32 0.0, %v985
  %v987 = vpop.f32.mrb[0].mxu0
  %v988 = vpop.f32.mrb[0].mxu0
  %v989 = vadd.f32 0.0, %v988
  %v990 = vpop.f32.mrb[0].mxu0
  %991 = vdwg.mxu0
  %v992 = vadd.f32 %v436, %v986
  %v993 = vadd.f32 %v536, %v989
  %v994 = vxor.u32 %v992, 2147483648
  %v995 = vxor.u32 %v993, 2147483648
  %v996 = vmul.f32 %v994, 1.442695
  %v997 = vpow.pop %v996
  %v998 = vmul.f32 %v995, 1.442695
  %v999 = vpow.pop %v998
  %v1000 = vadd.f32 %v997, 1.0
  %v1001 = vadd.f32 %v999, 1.0
  %v1002 = vrcp.pop %v1000
  %v1003 = vmul.f32 1.0, %v1002
  %v1004 = vrcp.pop %v1001
  %v1005 = vmul.f32 1.0, %v1004
  %v1006 = vtanh.pop %v992
  %v1007 = vtanh.pop %v993
  %v1008 = vmul.f32 %v1003, %v913
  %v1009 = vmul.f32 %v1005, %v914
  %1012 = vrot.lane.b32.xlu0 %v1006, 32
  %v1013 = vpop.permute.xlu0 %1012
  %1014 = vrot.lane.b32.xlu0 %v1007, 32
  %v1015 = vpop.permute.xlu0 %1014
  %v1018 = vmul.f32 %v1003, %v1013
  %v1019 = vmul.f32 %v1005, %v1015
  %1022 = vrot.lane.b32.xlu0 %v1018, 32
  %v1023 = vpop.permute.xlu0 %1022
  %1024 = vrot.lane.b32.xlu0 %v1019, 32
  %v1025 = vpop.permute.xlu0 %1024
  %v1028 = vadd.f32 %v1008, %v1023
  %v1029 = vadd.f32 %v1009, %v1025
  %v1030 = vtanh.pop %v1028
  %v1031 = vtanh.pop %v1029
  %1034 = vrot.lane.b32.xlu0 %v1030, 32
  %v1035 = vpop.permute.xlu0 %1034
  %1036 = vrot.lane.b32.xlu0 %v1031, 32
  %v1037 = vpop.permute.xlu0 %1036
  %v1040 = vmul.f32 %v1003, %v1035
  %v1041 = vmul.f32 %v1005, %v1037
  %v1042 = vmax.f32 %v927, %v1040
  %v1043 = vmax.f32 %v928, %v1041
  %1046 = vrot.lane.b32.xlu0 %v1040, 64
  %v1047 = vpop.permute.xlu0 %1046
  %1048 = vrot.lane.b32.xlu0 %v1041, 64
  %v1049 = vpop.permute.xlu0 %1048
  %1052 = vrot.lane.b32.xlu0 %v1040, 96
  %v1053 = vpop.permute.xlu0 %1052
  %1054 = vrot.lane.b32.xlu0 %v1041, 96
  %v1055 = vpop.permute.xlu0 %1054
  %v1058 = vsel %vm377, %v1047, %v1053
  %v1059 = vsel %vm377, %v1049, %v1055
  %v1060 = vmul.f32 %v1058, %v575
  %v1061 = vmul.f32 %v1059, %v576
  %v1062 = vpack.c.bf16 %v1061, %v1060
  %v1064 = vsel %vm604, %v1062, 0
  %1066 = vmatprep.subr.bf16.mxu0 0
  %1067 = vmatpush1.bf16.msra.mxu0 %v596
  %1068 = vmatprep.subr.bf16.mxu0 0
  %1069 = vmatpush1.bf16.msra.mxu0 %v597
  %1070 = vmatprep.subr.bf16.mxu0 0
  %1071 = vmatpush1.bf16.msra.mxu0 %v598
  %1072 = vmatprep.subr.bf16.mxu0 0
  %1073 = vmatpush1.bf16.msra.mxu0 %v599
  %1074 = vmatprep.subr.bf16.mxu0 0
  %1075 = vmatpush1.bf16.msra.mxu0 0
  %1076 = vmatprep.subr.bf16.mxu0 0
  %1077 = vmatpush1.bf16.msra.mxu0 0
  %1078 = vmatprep.subr.bf16.mxu0 0
  %1079 = vmatpush1.bf16.msra.mxu0 0
  %1080 = vmatprep.subr.bf16.mxu0 0
  %1081 = vmatpush1.bf16.msra.mxu0 0
  %1082 = vmatprep.subr.bf16.mxu0 0
  %1083 = vmatpush1.bf16.msra.mxu0 0
  %1084 = vmatprep.subr.bf16.mxu0 0
  %1085 = vmatpush1.bf16.msra.mxu0 0
  %1086 = vmatprep.subr.bf16.mxu0 0
  %1087 = vmatpush1.bf16.msra.mxu0 0
  %1088 = vmatprep.subr.bf16.mxu0 0
  %1089 = vmatpush1.bf16.msra.mxu0 0
  %1090 = vmatprep.subr.bf16.mxu0 0
  %1091 = vmatpush1.bf16.msra.mxu0 0
  %1092 = vmatprep.subr.bf16.mxu0 0
  %1093 = vmatpush1.bf16.msra.mxu0 0
  %1094 = vmatprep.subr.bf16.mxu0 0
  %1095 = vmatpush1.bf16.msra.mxu0 0
  %1096 = vmatprep.subr.bf16.mxu0 0
  %1097 = vmatpush1.bf16.msra.mxu0 0
  %1098 = vmatprep.mubr.bf16.mxu0 0
  %1099 = vmatmul.mubr.bf16.gmra.mrb[0].mxu0 %v1064
  %v1100 = vpop.f32.mrb[0].mxu0
  %v1101 = vadd.f32 0.0, %v1100
  %v1102 = vpop.f32.mrb[0].mxu0
  %v1103 = vpop.f32.mrb[0].mxu0
  %v1104 = vadd.f32 0.0, %v1103
  %v1105 = vpop.f32.mrb[0].mxu0
  %1106 = vdwg.mxu0
  %v1107 = vadd.f32 %v441, %v1101
  %v1108 = vadd.f32 %v541, %v1104
  %v1109 = vxor.u32 %v1107, 2147483648
  %v1110 = vxor.u32 %v1108, 2147483648
  %v1111 = vmul.f32 %v1109, 1.442695
  %v1112 = vpow.pop %v1111
  %v1113 = vmul.f32 %v1110, 1.442695
  %v1114 = vpow.pop %v1113
  %v1115 = vadd.f32 %v1112, 1.0
  %v1116 = vadd.f32 %v1114, 1.0
  %v1117 = vrcp.pop %v1115
  %v1118 = vmul.f32 1.0, %v1117
  %v1119 = vrcp.pop %v1116
  %v1120 = vmul.f32 1.0, %v1119
  %v1121 = vtanh.pop %v1107
  %v1122 = vtanh.pop %v1108
  %v1123 = vmul.f32 %v1118, %v1028
  %v1124 = vmul.f32 %v1120, %v1029
  %1127 = vrot.lane.b32.xlu0 %v1121, 32
  %v1128 = vpop.permute.xlu0 %1127
  %1129 = vrot.lane.b32.xlu0 %v1122, 32
  %v1130 = vpop.permute.xlu0 %1129
  %v1133 = vmul.f32 %v1118, %v1128
  %v1134 = vmul.f32 %v1120, %v1130
  %1137 = vrot.lane.b32.xlu0 %v1133, 32
  %v1138 = vpop.permute.xlu0 %1137
  %1139 = vrot.lane.b32.xlu0 %v1134, 32
  %v1140 = vpop.permute.xlu0 %1139
  %v1143 = vadd.f32 %v1123, %v1138
  %v1144 = vadd.f32 %v1124, %v1140
  %v1145 = vtanh.pop %v1143
  %v1146 = vtanh.pop %v1144
  %1149 = vrot.lane.b32.xlu0 %v1145, 32
  %v1150 = vpop.permute.xlu0 %1149
  %1151 = vrot.lane.b32.xlu0 %v1146, 32
  %v1152 = vpop.permute.xlu0 %1151
  %v1155 = vmul.f32 %v1118, %v1150
  %v1156 = vmul.f32 %v1120, %v1152
  %v1157 = vmax.f32 %v1042, %v1155
  %v1158 = vmax.f32 %v1043, %v1156
  %1161 = vrot.lane.b32.xlu0 %v1155, 64
  %v1162 = vpop.permute.xlu0 %1161
  %1163 = vrot.lane.b32.xlu0 %v1156, 64
  %v1164 = vpop.permute.xlu0 %1163
  %1167 = vrot.lane.b32.xlu0 %v1155, 96
  %v1168 = vpop.permute.xlu0 %1167
  %1169 = vrot.lane.b32.xlu0 %v1156, 96
  %v1170 = vpop.permute.xlu0 %1169
  %v1173 = vsel %vm377, %v1162, %v1168
  %v1174 = vsel %vm377, %v1164, %v1170
  %v1175 = vmul.f32 %v1173, %v575
  %v1176 = vmul.f32 %v1174, %v576
  %v1177 = vpack.c.bf16 %v1176, %v1175
  %v1179 = vsel %vm604, %v1177, 0
  %1181 = vmatprep.subr.bf16.mxu0 0
  %1182 = vmatpush1.bf16.msra.mxu0 %v596
  %1183 = vmatprep.subr.bf16.mxu0 0
  %1184 = vmatpush1.bf16.msra.mxu0 %v597
  %1185 = vmatprep.subr.bf16.mxu0 0
  %1186 = vmatpush1.bf16.msra.mxu0 %v598
  %1187 = vmatprep.subr.bf16.mxu0 0
  %1188 = vmatpush1.bf16.msra.mxu0 %v599
  %1189 = vmatprep.subr.bf16.mxu0 0
  %1190 = vmatpush1.bf16.msra.mxu0 0
  %1191 = vmatprep.subr.bf16.mxu0 0
  %1192 = vmatpush1.bf16.msra.mxu0 0
  %1193 = vmatprep.subr.bf16.mxu0 0
  %1194 = vmatpush1.bf16.msra.mxu0 0
  %1195 = vmatprep.subr.bf16.mxu0 0
  %1196 = vmatpush1.bf16.msra.mxu0 0
  %1197 = vmatprep.subr.bf16.mxu0 0
  %1198 = vmatpush1.bf16.msra.mxu0 0
  %1199 = vmatprep.subr.bf16.mxu0 0
  %1200 = vmatpush1.bf16.msra.mxu0 0
  %1201 = vmatprep.subr.bf16.mxu0 0
  %1202 = vmatpush1.bf16.msra.mxu0 0
  %1203 = vmatprep.subr.bf16.mxu0 0
  %1204 = vmatpush1.bf16.msra.mxu0 0
  %1205 = vmatprep.subr.bf16.mxu0 0
  %1206 = vmatpush1.bf16.msra.mxu0 0
  %1207 = vmatprep.subr.bf16.mxu0 0
  %1208 = vmatpush1.bf16.msra.mxu0 0
  %1209 = vmatprep.subr.bf16.mxu0 0
  %1210 = vmatpush1.bf16.msra.mxu0 0
  %1211 = vmatprep.subr.bf16.mxu0 0
  %1212 = vmatpush1.bf16.msra.mxu0 0
  %1213 = vmatprep.mubr.bf16.mxu0 0
  %1214 = vmatmul.mubr.bf16.gmra.mrb[0].mxu0 %v1179
  %v1215 = vpop.f32.mrb[0].mxu0
  %v1216 = vadd.f32 0.0, %v1215
  %v1217 = vpop.f32.mrb[0].mxu0
  %v1218 = vpop.f32.mrb[0].mxu0
  %v1219 = vadd.f32 0.0, %v1218
  %v1220 = vpop.f32.mrb[0].mxu0
  %1221 = vdwg.mxu0
  %v1222 = vadd.f32 %v444, %v1216
  %v1223 = vadd.f32 %v544, %v1219
  %v1224 = vxor.u32 %v1222, 2147483648
  %v1225 = vxor.u32 %v1223, 2147483648
  %v1226 = vmul.f32 %v1224, 1.442695
  %v1227 = vpow.pop %v1226
  %v1228 = vmul.f32 %v1225, 1.442695
  %v1229 = vpow.pop %v1228
  %v1230 = vadd.f32 %v1227, 1.0
  %v1231 = vadd.f32 %v1229, 1.0
  %v1232 = vrcp.pop %v1230
  %v1233 = vmul.f32 1.0, %v1232
  %v1234 = vrcp.pop %v1231
  %v1235 = vmul.f32 1.0, %v1234
  %v1236 = vtanh.pop %v1222
  %v1237 = vtanh.pop %v1223
  %v1238 = vmul.f32 %v1233, %v1143
  %v1239 = vmul.f32 %v1235, %v1144
  %1242 = vrot.lane.b32.xlu0 %v1236, 32
  %v1243 = vpop.permute.xlu0 %1242
  %1244 = vrot.lane.b32.xlu0 %v1237, 32
  %v1245 = vpop.permute.xlu0 %1244
  %v1248 = vmul.f32 %v1233, %v1243
  %v1249 = vmul.f32 %v1235, %v1245
  %1252 = vrot.lane.b32.xlu0 %v1248, 32
  %v1253 = vpop.permute.xlu0 %1252
  %1254 = vrot.lane.b32.xlu0 %v1249, 32
  %v1255 = vpop.permute.xlu0 %1254
  %v1258 = vadd.f32 %v1238, %v1253
  %v1259 = vadd.f32 %v1239, %v1255
  %v1260 = vtanh.pop %v1258
  %v1261 = vtanh.pop %v1259
  %1264 = vrot.lane.b32.xlu0 %v1260, 32
  %v1265 = vpop.permute.xlu0 %1264
  %1266 = vrot.lane.b32.xlu0 %v1261, 32
  %v1267 = vpop.permute.xlu0 %1266
  %v1270 = vmul.f32 %v1233, %v1265
  %v1271 = vmul.f32 %v1235, %v1267
  %v1272 = vmax.f32 %v1157, %v1270
  %v1273 = vmax.f32 %v1158, %v1271
  %1276 = vrot.lane.b32.xlu0 %v1270, 64
  %v1277 = vpop.permute.xlu0 %1276
  %1278 = vrot.lane.b32.xlu0 %v1271, 64
  %v1279 = vpop.permute.xlu0 %1278
  %1282 = vrot.lane.b32.xlu0 %v1270, 96
  %v1283 = vpop.permute.xlu0 %1282
  %1284 = vrot.lane.b32.xlu0 %v1271, 96
  %v1285 = vpop.permute.xlu0 %1284
  %v1288 = vsel %vm377, %v1277, %v1283
  %v1289 = vsel %vm377, %v1279, %v1285
  %v1290 = vmul.f32 %v1288, %v575
  %v1291 = vmul.f32 %v1289, %v576
  %v1292 = vpack.c.bf16 %v1291, %v1290
  %v1294 = vsel %vm604, %v1292, 0
  %1296 = vmatprep.subr.bf16.mxu0 0
  %1297 = vmatpush1.bf16.msra.mxu0 %v596
  %1298 = vmatprep.subr.bf16.mxu0 0
  %1299 = vmatpush1.bf16.msra.mxu0 %v597
  %1300 = vmatprep.subr.bf16.mxu0 0
  %1301 = vmatpush1.bf16.msra.mxu0 %v598
  %1302 = vmatprep.subr.bf16.mxu0 0
  %1303 = vmatpush1.bf16.msra.mxu0 %v599
  %1304 = vmatprep.subr.bf16.mxu0 0
  %1305 = vmatpush1.bf16.msra.mxu0 0
  %1306 = vmatprep.subr.bf16.mxu0 0
  %1307 = vmatpush1.bf16.msra.mxu0 0
  %1308 = vmatprep.subr.bf16.mxu0 0
  %1309 = vmatpush1.bf16.msra.mxu0 0
  %1310 = vmatprep.subr.bf16.mxu0 0
  %1311 = vmatpush1.bf16.msra.mxu0 0
  %1312 = vmatprep.subr.bf16.mxu0 0
  %1313 = vmatpush1.bf16.msra.mxu0 0
  %1314 = vmatprep.subr.bf16.mxu0 0
  %1315 = vmatpush1.bf16.msra.mxu0 0
  %1316 = vmatprep.subr.bf16.mxu0 0
  %1317 = vmatpush1.bf16.msra.mxu0 0
  %1318 = vmatprep.subr.bf16.mxu0 0
  %1319 = vmatpush1.bf16.msra.mxu0 0
  %1320 = vmatprep.subr.bf16.mxu0 0
  %1321 = vmatpush1.bf16.msra.mxu0 0
  %1322 = vmatprep.subr.bf16.mxu0 0
  %1323 = vmatpush1.bf16.msra.mxu0 0
  %1324 = vmatprep.subr.bf16.mxu0 0
  %1325 = vmatpush1.bf16.msra.mxu0 0
  %1326 = vmatprep.subr.bf16.mxu0 0
  %1327 = vmatpush1.bf16.msra.mxu0 0
  %1328 = vmatprep.mubr.bf16.mxu0 0
  %1329 = vmatmul.mubr.bf16.gmra.mrb[0].mxu0 %v1294
  %v1330 = vpop.f32.mrb[0].mxu0
  %v1331 = vadd.f32 0.0, %v1330
  %v1332 = vpop.f32.mrb[0].mxu0
  %v1333 = vpop.f32.mrb[0].mxu0
  %v1334 = vadd.f32 0.0, %v1333
  %v1335 = vpop.f32.mrb[0].mxu0
  %1336 = vdwg.mxu0
  %v1337 = vadd.f32 %v449, %v1331
  %v1338 = vadd.f32 %v549, %v1334
  %v1339 = vxor.u32 %v1337, 2147483648
  %v1340 = vxor.u32 %v1338, 2147483648
  %v1341 = vmul.f32 %v1339, 1.442695
  %v1342 = vpow.pop %v1341
  %v1343 = vmul.f32 %v1340, 1.442695
  %v1344 = vpow.pop %v1343
  %v1345 = vadd.f32 %v1342, 1.0
  %v1346 = vadd.f32 %v1344, 1.0
  %v1347 = vrcp.pop %v1345
  %v1348 = vmul.f32 1.0, %v1347
  %v1349 = vrcp.pop %v1346
  %v1350 = vmul.f32 1.0, %v1349
  %v1351 = vtanh.pop %v1337
  %v1352 = vtanh.pop %v1338
  %v1353 = vmul.f32 %v1348, %v1258
  %v1354 = vmul.f32 %v1350, %v1259
  %1357 = vrot.lane.b32.xlu0 %v1351, 32
  %v1358 = vpop.permute.xlu0 %1357
  %1359 = vrot.lane.b32.xlu0 %v1352, 32
  %v1360 = vpop.permute.xlu0 %1359
  %v1363 = vmul.f32 %v1348, %v1358
  %v1364 = vmul.f32 %v1350, %v1360
  %1367 = vrot.lane.b32.xlu0 %v1363, 32
  %v1368 = vpop.permute.xlu0 %1367
  %1369 = vrot.lane.b32.xlu0 %v1364, 32
  %v1370 = vpop.permute.xlu0 %1369
  %v1373 = vadd.f32 %v1353, %v1368
  %v1374 = vadd.f32 %v1354, %v1370
  %v1375 = vtanh.pop %v1373
  %v1376 = vtanh.pop %v1374
  %1379 = vrot.lane.b32.xlu0 %v1375, 32
  %v1380 = vpop.permute.xlu0 %1379
  %1381 = vrot.lane.b32.xlu0 %v1376, 32
  %v1382 = vpop.permute.xlu0 %1381
  %v1385 = vmul.f32 %v1348, %v1380
  %v1386 = vmul.f32 %v1350, %v1382
  %v1387 = vmax.f32 %v1272, %v1385
  %v1388 = vmax.f32 %v1273, %v1386
  %1391 = vrot.lane.b32.xlu0 %v1385, 64
  %v1392 = vpop.permute.xlu0 %1391
  %1393 = vrot.lane.b32.xlu0 %v1386, 64
  %v1394 = vpop.permute.xlu0 %1393
  %1397 = vrot.lane.b32.xlu0 %v1385, 96
  %v1398 = vpop.permute.xlu0 %1397
  %1399 = vrot.lane.b32.xlu0 %v1386, 96
  %v1400 = vpop.permute.xlu0 %1399
  %v1403 = vsel %vm377, %v1392, %v1398
  %v1404 = vsel %vm377, %v1394, %v1400
  %v1405 = vmul.f32 %v1403, %v575
  %v1406 = vmul.f32 %v1404, %v576
  %v1407 = vpack.c.bf16 %v1406, %v1405
  %v1409 = vsel %vm604, %v1407, 0
  %1411 = vmatprep.subr.bf16.mxu0 0
  %1412 = vmatpush1.bf16.msra.mxu0 %v596
  %1413 = vmatprep.subr.bf16.mxu0 0
  %1414 = vmatpush1.bf16.msra.mxu0 %v597
  %1415 = vmatprep.subr.bf16.mxu0 0
  %1416 = vmatpush1.bf16.msra.mxu0 %v598
  %1417 = vmatprep.subr.bf16.mxu0 0
  %1418 = vmatpush1.bf16.msra.mxu0 %v599
  %1419 = vmatprep.subr.bf16.mxu0 0
  %1420 = vmatpush1.bf16.msra.mxu0 0
  %1421 = vmatprep.subr.bf16.mxu0 0
  %1422 = vmatpush1.bf16.msra.mxu0 0
  %1423 = vmatprep.subr.bf16.mxu0 0
  %1424 = vmatpush1.bf16.msra.mxu0 0
  %1425 = vmatprep.subr.bf16.mxu0 0
  %1426 = vmatpush1.bf16.msra.mxu0 0
  %1427 = vmatprep.subr.bf16.mxu0 0
  %1428 = vmatpush1.bf16.msra.mxu0 0
  %1429 = vmatprep.subr.bf16.mxu0 0
  %1430 = vmatpush1.bf16.msra.mxu0 0
  %1431 = vmatprep.subr.bf16.mxu0 0
  %1432 = vmatpush1.bf16.msra.mxu0 0
  %1433 = vmatprep.subr.bf16.mxu0 0
  %1434 = vmatpush1.bf16.msra.mxu0 0
  %1435 = vmatprep.subr.bf16.mxu0 0
  %1436 = vmatpush1.bf16.msra.mxu0 0
  %1437 = vmatprep.subr.bf16.mxu0 0
  %1438 = vmatpush1.bf16.msra.mxu0 0
  %1439 = vmatprep.subr.bf16.mxu0 0
  %1440 = vmatpush1.bf16.msra.mxu0 0
  %1441 = vmatprep.subr.bf16.mxu0 0
  %1442 = vmatpush1.bf16.msra.mxu0 0
  %1443 = vmatprep.mubr.bf16.mxu0 0
  %1444 = vmatmul.mubr.bf16.gmra.mrb[0].mxu0 %v1409
  %v1445 = vpop.f32.mrb[0].mxu0
  %v1446 = vadd.f32 0.0, %v1445
  %v1447 = vpop.f32.mrb[0].mxu0
  %v1448 = vpop.f32.mrb[0].mxu0
  %v1449 = vadd.f32 0.0, %v1448
  %v1450 = vpop.f32.mrb[0].mxu0
  %1451 = vdwg.mxu0
  %v1452 = vadd.f32 %v452, %v1446
  %v1453 = vadd.f32 %v552, %v1449
  %v1454 = vxor.u32 %v1452, 2147483648
  %v1455 = vxor.u32 %v1453, 2147483648
  %v1456 = vmul.f32 %v1454, 1.442695
  %v1457 = vpow.pop %v1456
  %v1458 = vmul.f32 %v1455, 1.442695
  %v1459 = vpow.pop %v1458
  %v1460 = vadd.f32 %v1457, 1.0
  %v1461 = vadd.f32 %v1459, 1.0
  %v1462 = vrcp.pop %v1460
  %v1463 = vmul.f32 1.0, %v1462
  %v1464 = vrcp.pop %v1461
  %v1465 = vmul.f32 1.0, %v1464
  %v1466 = vtanh.pop %v1452
  %v1467 = vtanh.pop %v1453
  %v1468 = vmul.f32 %v1463, %v1373
  %v1469 = vmul.f32 %v1465, %v1374
  %1472 = vrot.lane.b32.xlu0 %v1466, 32
  %v1473 = vpop.permute.xlu0 %1472
  %1474 = vrot.lane.b32.xlu0 %v1467, 32
  %v1475 = vpop.permute.xlu0 %1474
  %v1478 = vmul.f32 %v1463, %v1473
  %v1479 = vmul.f32 %v1465, %v1475
  %1482 = vrot.lane.b32.xlu0 %v1478, 32
  %v1483 = vpop.permute.xlu0 %1482
  %1484 = vrot.lane.b32.xlu0 %v1479, 32
  %v1485 = vpop.permute.xlu0 %1484
  %v1488 = vadd.f32 %v1468, %v1483
  %v1489 = vadd.f32 %v1469, %v1485
  %v1490 = vtanh.pop %v1488
  %v1491 = vtanh.pop %v1489
  %1494 = vrot.lane.b32.xlu0 %v1490, 32
  %v1495 = vpop.permute.xlu0 %1494
  %1496 = vrot.lane.b32.xlu0 %v1491, 32
  %v1497 = vpop.permute.xlu0 %1496
  %v1500 = vmul.f32 %v1463, %v1495
  %v1501 = vmul.f32 %v1465, %v1497
  %v1502 = vmax.f32 %v1387, %v1500
  %v1503 = vmax.f32 %v1388, %v1501
  %1505 = vrot.lane.b32.xlu0 %v1502, 64
  %v1506 = vpop.permute.xlu0 %1505
  %1509 = vrot.lane.b32.xlu0 %v1503, 96
  %v1510 = vpop.permute.xlu0 %1509
  %v1512 = vsel %vm377, %v1506, %v1510
  %v1513 = vld [vmem:[%s7] sm:$0x1]
  %v1515 = vlaneseq
  %v1516 = vshrl.u32 %v1515, 7
  %v1517 = vsub.s32 0, %v1516
  %v1518 = vrot.slane %v1513, %v1517
  %v1520 = vmul.f32 %v1512, %v1518
  %v1521 = vld [vmem:[%s8] sm:$0x1]
  %v1523 = vlaneseq
  %v1524 = vshrl.u32 %v1523, 7
  %v1525 = vsub.s32 0, %v1524
  %v1526 = vrot.slane %v1521, %v1525
  %v1528 = vadd.f32 %v1520, %v1526
  %v1529 = vpack.c.bf16 %v1528, %v1528
  %v1530 = vld [vmem:[%s9] sm:$0xf]
  %v1531 = vld [vmem:[%s9 + $0x4] sm:$0xf]
  %v1532 = vld [vmem:[%s9 + $0x8] sm:$0xf]
  %v1533 = vld [vmem:[%s9 + $0xc] sm:$0xf]
  %v1534 = vld [vmem:[%s9 + $0x10] sm:$0xf]
  %v1535 = vld [vmem:[%s9 + $0x14] sm:$0xf]
  %v1536 = vld [vmem:[%s9 + $0x18] sm:$0xf]
  %v1537 = vld [vmem:[%s9 + $0x1c] sm:$0xf]
  %v1538 = vld [vmem:[%s10] sm:$0x1]
  %v1540 = vlaneseq
  %v1541 = vshrl.u32 %v1540, 7
  %v1542 = vsub.s32 0, %v1541
  %v1543 = vrot.slane %v1538, %v1542
  %v1553 = vunpack.c.l.b16 %v1530
  %v1554 = vunpack.c.l.b16 %v1531
  %v1555 = vunpack.c.l.b16 %v1532
  %v1556 = vunpack.c.l.b16 %v1533
  %v1557 = vunpack.c.l.b16 %v1534
  %v1558 = vunpack.c.l.b16 %v1535
  %v1559 = vunpack.c.l.b16 %v1536
  %v1560 = vunpack.c.l.b16 %v1537
  %v1561 = vpack.c.b16 %v1554, %v1553
  %v1562 = vpack.c.b16 %v1556, %v1555
  %v1563 = vpack.c.b16 %v1558, %v1557
  %v1564 = vpack.c.b16 %v1560, %v1559
  %v1570 = vsel %vm604, %v1529, 0
  %1572 = vmatprep.subr.bf16.mxu0 0
  %1573 = vmatpush1.bf16.msra.mxu0 %v1561
  %1574 = vmatprep.subr.bf16.mxu0 0
  %1575 = vmatpush1.bf16.msra.mxu0 %v1562
  %1576 = vmatprep.subr.bf16.mxu0 0
  %1577 = vmatpush1.bf16.msra.mxu0 %v1563
  %1578 = vmatprep.subr.bf16.mxu0 0
  %1579 = vmatpush1.bf16.msra.mxu0 %v1564
  %1580 = vmatprep.subr.bf16.mxu0 0
  %1581 = vmatpush1.bf16.msra.mxu0 0
  %1582 = vmatprep.subr.bf16.mxu0 0
  %1583 = vmatpush1.bf16.msra.mxu0 0
  %1584 = vmatprep.subr.bf16.mxu0 0
  %1585 = vmatpush1.bf16.msra.mxu0 0
  %1586 = vmatprep.subr.bf16.mxu0 0
  %1587 = vmatpush1.bf16.msra.mxu0 0
  %1588 = vmatprep.subr.bf16.mxu0 0
  %1589 = vmatpush1.bf16.msra.mxu0 0
  %1590 = vmatprep.subr.bf16.mxu0 0
  %1591 = vmatpush1.bf16.msra.mxu0 0
  %1592 = vmatprep.subr.bf16.mxu0 0
  %1593 = vmatpush1.bf16.msra.mxu0 0
  %1594 = vmatprep.subr.bf16.mxu0 0
  %1595 = vmatpush1.bf16.msra.mxu0 0
  %1596 = vmatprep.subr.bf16.mxu0 0
  %1597 = vmatpush1.bf16.msra.mxu0 0
  %1598 = vmatprep.subr.bf16.mxu0 0
  %1599 = vmatpush1.bf16.msra.mxu0 0
  %1600 = vmatprep.subr.bf16.mxu0 0
  %1601 = vmatpush1.bf16.msra.mxu0 0
  %1602 = vmatprep.subr.bf16.mxu0 0
  %1603 = vmatpush1.bf16.msra.mxu0 0
  %1604 = vmatprep.mubr.bf16.mxu0 0
  %1605 = vmatmul.mubr.bf16.gmra.mrb[0].mxu0 %v1570
  %v1606 = vpop.f32.mrb[0].mxu0
  %v1607 = vadd.f32 %v1543, %v1606
  %v1608 = vpop.f32.mrb[0].mxu0
  %v1609 = vpop.f32.mrb[0].mxu0
  %v1610 = vpop.f32.mrb[0].mxu0
  %1611 = vdwg.mxu0
  %v1612 = vld [vmem:[%s11] sm:$0x1]
  %v1614 = vlaneseq
  %v1615 = vshrl.u32 %v1614, 7
  %v1616 = vsub.s32 0, %v1615
  %v1617 = vrot.slane %v1612, %v1616
  %v1619 = vmul.f32 %v1607, %v1617
  %v1620 = vld [vmem:[%s12] sm:$0x1]
  %v1622 = vlaneseq
  %v1623 = vshrl.u32 %v1622, 7
  %v1624 = vsub.s32 0, %v1623
  %v1625 = vrot.slane %v1620, %v1624
  %v1627 = vadd.f32 %v1619, %v1625
  %v1628 = vmax.f32 %v1627, 0.0
  %v1629 = vpack.c.bf16 %v1628, %v1628
  %v1630 = vld [vmem:[%s13] sm:$0xf]
  %v1631 = vld [vmem:[%s13 + $0x4] sm:$0xf]
  %v1632 = vld [vmem:[%s13 + $0x8] sm:$0xf]
  %v1633 = vld [vmem:[%s13 + $0xc] sm:$0xf]
  %v1634 = vld [vmem:[%s13 + $0x10] sm:$0xf]
  %v1635 = vld [vmem:[%s13 + $0x14] sm:$0xf]
  %v1636 = vld [vmem:[%s13 + $0x18] sm:$0xf]
  %v1637 = vld [vmem:[%s13 + $0x1c] sm:$0xf]
  %v1638 = vld [vmem:[%s13 + $0x20] sm:$0xf]
  %v1639 = vld [vmem:[%s13 + $0x24] sm:$0xf]
  %v1640 = vld [vmem:[%s13 + $0x28] sm:$0xf]
  %v1641 = vld [vmem:[%s13 + $0x2c] sm:$0xf]
  %v1642 = vld [vmem:[%s13 + $0x30] sm:$0xf]
  %v1643 = vld [vmem:[%s13 + $0x34] sm:$0xf]
  %v1644 = vld [vmem:[%s13 + $0x38] sm:$0xf]
  %v1645 = vld [vmem:[%s13 + $0x3c] sm:$0xf]
  %v1646 = vld [vmem:[%s14] sm:$0x1]
  %v1648 = vlaneseq
  %v1649 = vshrl.u32 %v1648, 7
  %v1650 = vsub.s32 0, %v1649
  %v1651 = vrot.slane %v1646, %v1650
  %v1669 = vunpack.c.l.b16 %v1630
  %v1670 = vunpack.c.l.b16 %v1631
  %v1671 = vunpack.c.l.b16 %v1632
  %v1672 = vunpack.c.l.b16 %v1633
  %v1673 = vunpack.c.l.b16 %v1634
  %v1674 = vunpack.c.l.b16 %v1635
  %v1675 = vunpack.c.l.b16 %v1636
  %v1676 = vunpack.c.l.b16 %v1637
  %v1677 = vunpack.c.l.b16 %v1638
  %v1678 = vunpack.c.l.b16 %v1639
  %v1679 = vunpack.c.l.b16 %v1640
  %v1680 = vunpack.c.l.b16 %v1641
  %v1681 = vunpack.c.l.b16 %v1642
  %v1682 = vunpack.c.l.b16 %v1643
  %v1683 = vunpack.c.l.b16 %v1644
  %v1684 = vunpack.c.l.b16 %v1645
  %v1685 = vpack.c.b16 %v1670, %v1669
  %v1686 = vpack.c.b16 %v1672, %v1671
  %v1687 = vpack.c.b16 %v1674, %v1673
  %v1688 = vpack.c.b16 %v1676, %v1675
  %v1689 = vpack.c.b16 %v1678, %v1677
  %v1690 = vpack.c.b16 %v1680, %v1679
  %v1691 = vpack.c.b16 %v1682, %v1681
  %v1692 = vpack.c.b16 %v1684, %v1683
  %1701 = vmatprep.subr.bf16.mxu0 0
  %1702 = vmatpush1.bf16.msra.mxu0 %v1685
  %1703 = vmatprep.subr.bf16.mxu0 0
  %1704 = vmatpush1.bf16.msra.mxu0 %v1686
  %1705 = vmatprep.subr.bf16.mxu0 0
  %1706 = vmatpush1.bf16.msra.mxu0 %v1687
  %1707 = vmatprep.subr.bf16.mxu0 0
  %1708 = vmatpush1.bf16.msra.mxu0 %v1688
  %1709 = vmatprep.subr.bf16.mxu0 0
  %1710 = vmatpush1.bf16.msra.mxu0 %v1689
  %1711 = vmatprep.subr.bf16.mxu0 0
  %1712 = vmatpush1.bf16.msra.mxu0 %v1690
  %1713 = vmatprep.subr.bf16.mxu0 0
  %1714 = vmatpush1.bf16.msra.mxu0 %v1691
  %1715 = vmatprep.subr.bf16.mxu0 0
  %1716 = vmatpush1.bf16.msra.mxu0 %v1692
  %1717 = vmatprep.subr.bf16.mxu0 0
  %1718 = vmatpush1.bf16.msra.mxu0 0
  %1719 = vmatprep.subr.bf16.mxu0 0
  %1720 = vmatpush1.bf16.msra.mxu0 0
  %1721 = vmatprep.subr.bf16.mxu0 0
  %1722 = vmatpush1.bf16.msra.mxu0 0
  %1723 = vmatprep.subr.bf16.mxu0 0
  %1724 = vmatpush1.bf16.msra.mxu0 0
  %1725 = vmatprep.subr.bf16.mxu0 0
  %1726 = vmatpush1.bf16.msra.mxu0 0
  %1727 = vmatprep.subr.bf16.mxu0 0
  %1728 = vmatpush1.bf16.msra.mxu0 0
  %1729 = vmatprep.subr.bf16.mxu0 0
  %1730 = vmatpush1.bf16.msra.mxu0 0
  %1731 = vmatprep.subr.bf16.mxu0 0
  %1732 = vmatpush1.bf16.msra.mxu0 0
  %1733 = vmatprep.mubr.bf16.mxu0 0
  %1734 = vmatmul.mubr.bf16.gmra.mrb[0].mxu0 %v1629
  %v1735 = vpop.f32.mrb[0].mxu0
  %v1736 = vadd.f32 %v1651, %v1735
  %v1737 = vpop.f32.mrb[0].mxu0
  %v1738 = vpop.f32.mrb[0].mxu0
  %v1739 = vpop.f32.mrb[0].mxu0
  %1740 = vdwg.mxu0
  %v1741 = vld [vmem:[%s15] sm:$0x1]
  %v1743 = vlaneseq
  %v1744 = vshrl.u32 %v1743, 7
  %v1745 = vsub.s32 0, %v1744
  %v1746 = vrot.slane %v1741, %v1745
  %v1748 = vmul.f32 %v1736, %v1746
  %v1749 = vld [vmem:[%s16] sm:$0x1]
  %v1751 = vlaneseq
  %v1752 = vshrl.u32 %v1751, 7
  %v1753 = vsub.s32 0, %v1752
  %v1754 = vrot.slane %v1749, %v1753
  %v1756 = vadd.f32 %v1748, %v1754
  %v1757 = vmax.f32 %v1756, 0.0
  %v1758 = vpack.c.bf16 %v1757, %v1757
  %v1759 = vld [vmem:[%s17] sm:$0xf]
  %v1760 = vld [vmem:[%s17 + $0x4] sm:$0xf]
  %v1761 = vld [vmem:[%s17 + $0x8] sm:$0xf]
  %v1762 = vld [vmem:[%s17 + $0xc] sm:$0xf]
  %v1763 = vld [vmem:[%s17 + $0x10] sm:$0xf]
  %v1764 = vld [vmem:[%s17 + $0x14] sm:$0xf]
  %v1765 = vld [vmem:[%s17 + $0x18] sm:$0xf]
  %v1766 = vld [vmem:[%s17 + $0x1c] sm:$0xf]
  %v1767 = vld [vmem:[%s18] sm:$0x1]
  %v1769 = vlaneseq
  %v1770 = vshrl.u32 %v1769, 7
  %v1771 = vsub.s32 0, %v1770
  %v1772 = vrot.slane %v1767, %v1771
  %v1782 = vunpack.c.l.b16 %v1759
  %v1783 = vunpack.c.l.b16 %v1760
  %v1784 = vunpack.c.l.b16 %v1761
  %v1785 = vunpack.c.l.b16 %v1762
  %v1786 = vunpack.c.l.b16 %v1763
  %v1787 = vunpack.c.l.b16 %v1764
  %v1788 = vunpack.c.l.b16 %v1765
  %v1789 = vunpack.c.l.b16 %v1766
  %v1790 = vpack.c.b16 %v1783, %v1782
  %v1791 = vpack.c.b16 %v1785, %v1784
  %v1792 = vpack.c.b16 %v1787, %v1786
  %v1793 = vpack.c.b16 %v1789, %v1788
  %v1799 = vsel %vm604, %v1758, 0
  %1801 = vmatprep.subr.bf16.mxu0 0
  %1802 = vmatpush1.bf16.msra.mxu0 %v1790
  %1803 = vmatprep.subr.bf16.mxu0 0
  %1804 = vmatpush1.bf16.msra.mxu0 %v1791
  %1805 = vmatprep.subr.bf16.mxu0 0
  %1806 = vmatpush1.bf16.msra.mxu0 %v1792
  %1807 = vmatprep.subr.bf16.mxu0 0
  %1808 = vmatpush1.bf16.msra.mxu0 %v1793
  %1809 = vmatprep.subr.bf16.mxu0 0
  %1810 = vmatpush1.bf16.msra.mxu0 0
  %1811 = vmatprep.subr.bf16.mxu0 0
  %1812 = vmatpush1.bf16.msra.mxu0 0
  %1813 = vmatprep.subr.bf16.mxu0 0
  %1814 = vmatpush1.bf16.msra.mxu0 0
  %1815 = vmatprep.subr.bf16.mxu0 0
  %1816 = vmatpush1.bf16.msra.mxu0 0
  %1817 = vmatprep.subr.bf16.mxu0 0
  %1818 = vmatpush1.bf16.msra.mxu0 0
  %1819 = vmatprep.subr.bf16.mxu0 0
  %1820 = vmatpush1.bf16.msra.mxu0 0
  %1821 = vmatprep.subr.bf16.mxu0 0
  %1822 = vmatpush1.bf16.msra.mxu0 0
  %1823 = vmatprep.subr.bf16.mxu0 0
  %1824 = vmatpush1.bf16.msra.mxu0 0
  %1825 = vmatprep.subr.bf16.mxu0 0
  %1826 = vmatpush1.bf16.msra.mxu0 0
  %1827 = vmatprep.subr.bf16.mxu0 0
  %1828 = vmatpush1.bf16.msra.mxu0 0
  %1829 = vmatprep.subr.bf16.mxu0 0
  %1830 = vmatpush1.bf16.msra.mxu0 0
  %1831 = vmatprep.subr.bf16.mxu0 0
  %1832 = vmatpush1.bf16.msra.mxu0 0
  %1833 = vmatprep.mubr.bf16.mxu0 0
  %1834 = vmatmul.mubr.bf16.gmra.mrb[0].mxu0 %v1799
  %v1835 = vpop.f32.mrb[0].mxu0
  %v1836 = vadd.f32 %v1772, %v1835
  %v1837 = vpop.f32.mrb[0].mxu0
  %v1838 = vpop.f32.mrb[0].mxu0
  %v1839 = vpop.f32.mrb[0].mxu0
  %1840 = vdwg.mxu0
  %1841 = vmax.xlane.f32.xlu0 %v1836
  %v1842 = vpop.xlane.xlu0 %1841
  %v1843 = vsub.f32 %v1836, %v1842
  %v1844 = vmul.f32 %v1843, 1.442695
  %v1845 = vpow.pop %v1844
  %1846 = vadd.xlane.f32.xlu0 %v1845
  %v1847 = vpop.xlane.xlu0 %1846
  %v1848 = vrcp.pop %v1847
  %v1849 = vmul.f32 %v1845, %v1848
  %1850 = vst [vmem:[%s19] sm:$0xff] %v1849
  // Predicated region
  $region78: #{maxrnn_forward.1} parent=0 // pred_check
    _
  $region79: #{maxrnn_forward.1} parent=0 // pred_check_branch
    %1852 = sbr.rel (0) target = $region81
  $region80: #{maxrnn_forward.1} parent=0 // pred_region
    _
  $region81: #{maxrnn_forward.1} parent=0 // pred_fallthru
    _
  // Predicated region
  $region82: #{maxrnn_forward.1} parent=0 // pred_check
    _
  $region83: #{maxrnn_forward.1} parent=0 // pred_check_branch
    %1854 = sbr.rel (0) target = $region85
  $region84: #{maxrnn_forward.1} parent=0 // pred_region
    _
  $region85: #{maxrnn_forward.1} parent=0 // pred_fallthru
    _

</llo_original>
